<compile_context>
chip_gen: v5e
topology: v5e:2x2
jax: 0.10.0
libtpu: 0.0.40
codegen_flags: <defaults>
</compile_context>

<pallas_src>
import functools

import jax
import jax.numpy as jnp
from jax import lax
from jax.experimental import pallas as pl
from jax.experimental.pallas import tpu as pltpu


def _conv_relu_kernel(x_ref, w_ref, b_ref, o_ref, *, tile_h, W, Cin, K):
    """One (batch, row-tile) grid step.

    x_ref : (1, tile_h + K - 1, W + K - 1, Cin)   halo slab of padded NHWC input (bf16)
    w_ref : (K*K*Cin, Cout_p)                     weights, (kh, kw, cin)-major, Cout padded
    b_ref : (1, Cout_p)                           bias (f32, zero-padded)
    o_ref : (1, tile_h*W, Cout_p)                 output block (lane-dense last dim)
    """
    # im2col: gather the K*K shifted taps along the channel axis -> one deep matmul.
    taps = []
    for kh in range(K):
        for kw in range(K):
            taps.append(x_ref[0, kh:kh + tile_h, kw:kw + W, :])  # (tile_h, W, Cin)
    patch = jnp.concatenate(taps, axis=-1)                       # (tile_h, W, K*K*Cin)
    patch = patch.reshape(tile_h * W, K * K * Cin)

    acc = jnp.dot(patch, w_ref[...], preferred_element_type=jnp.float32)
    acc = acc + b_ref[...]            # broadcast bias (1, Cout_p)
    acc = jnp.maximum(acc, 0.0)       # ReLU
    o_ref[0] = acc.astype(o_ref.dtype)


def _pick_tile_h(H, W, Cin, Cout_p, K, act_itemsize, out_itemsize,
                 budget_bytes=24 << 20):
    """Largest divisor of H whose per-step VMEM footprint fits the budget.

    Footprint: double-buffered input slab + double-buffered output block
    + (single-buffered, grid-invariant) weights + bias.  Tiles with nH > 1 must
    keep tile_h*W a multiple of 8 for the output BlockSpec (8,128) rule.
    """
    pad = (K - 1) // 2
    w_bytes = K * K * Cin * Cout_p * act_itemsize + Cout_p * 4
    valid, fitting = [], []
    for t in range(H, 0, -1):
        if H % t:
            continue
        if (H // t) > 1 and (t * W) % 8 != 0:
            continue
        valid.append(t)
        in_bytes = (t + 2 * pad) * (W + 2 * pad) * Cin * act_itemsize
        out_bytes = t * W * Cout_p * out_itemsize
        if 2 * (in_bytes + out_bytes) + w_bytes <= budget_bytes:
            fitting.append(t)
    if fitting:
        return fitting[0]           # biggest tile that fits the budget
    return valid[-1] if valid else H  # fall back to the smallest legal tile


def conv_relu_pallas(x_nchw, weight_oihw, bias, *, compute_dtype=jnp.bfloat16,
                     vmem_budget_bytes=24 << 20):
    """Equivalent of Conv(inp_dim, out_dim, 3, 1, bn=False, relu=True, bias=True).

    MXU inputs are cast to `compute_dtype` (bf16 by default — MXU-native on
    v5e/v6e/v7x) with f32 accumulation; pass jnp.float32 for bit-closer parity
    with the PyTorch f32 forward.
    """
    B, Cin, H, W = x_nchw.shape
    Cout, Cin_w, K, K2 = weight_oihw.shape
    assert Cin == Cin_w and K == K2
    assert K % 2 == 1, "padding=(K-1)//2 reproduces SAME only for odd K, stride 1"
    pad = (K - 1) // 2
    out_dtype = x_nchw.dtype
    act_itemsize = jnp.dtype(compute_dtype).itemsize
    out_itemsize = jnp.dtype(out_dtype).itemsize

    # Lane-dense Cout for the matmul N dim / accumulator / stores.
    Cout_p = ((Cout + 127) // 128) * 128

    # Row-tile size: biggest divisor of H that fits the VMEM budget.
    tH = _pick_tile_h(H, W, Cin, Cout_p, K, act_itemsize, out_itemsize,
                      budget_bytes=vmem_budget_bytes)
    nH = H // tH

    # ---- glue (plain JAX): layout, padding, halo tiles, weight repack ----
    # TODO(synk): in a full network keep activations NHWC across layers to avoid the
    # NCHW<->NHWC transpose HBM passes done here only for PyTorch parity.
    x = jnp.transpose(x_nchw, (0, 2, 3, 1)).astype(compute_dtype)           # (B,H,W,Cin)
    x = jnp.pad(x, ((0, 0), (pad, pad), (pad, pad), (0, 0)))                # (B,Hp,Wp,Cin)
    Wp = W + 2 * pad

    # Overlapping row tiles with a (K-1)-row halo, flattened over (B, nH) so the
    # kernel's input BlockSpec uses plain blocked indexing.  When nH == 1 this is a
    # no-op reshape (no halo duplication).
    # TODO(synk): for very wide images add W tiling as well (currently whole rows).
    x_tiles = jnp.stack(
        [x[:, h * tH: h * tH + tH + 2 * pad] for h in range(nH)], axis=1
    ).reshape(B * nH, tH + 2 * pad, Wp, Cin)

    # Weights: OIHW -> (K*K*Cin, Cout), (kh, kw, cin)-major; pad Cout to Cout_p.
    w = jnp.transpose(weight_oihw, (2, 3, 1, 0)).reshape(K * K * Cin, Cout)
    w = jnp.pad(w.astype(compute_dtype), ((0, 0), (0, Cout_p - Cout)))
    b2 = jnp.pad(bias.astype(jnp.float32), (0, Cout_p - Cout)).reshape(1, Cout_p)

    kernel = functools.partial(_conv_relu_kernel, tile_h=tH, W=W, Cin=Cin, K=K)

    cost = pl.CostEstimate(
        flops=2 * B * H * W * K * K * Cin * Cout_p,
        transcendentals=0,
        bytes_accessed=(x_tiles.size * act_itemsize + w.size * act_itemsize
                        + b2.size * 4 + B * H * W * Cout_p * out_itemsize),
    )

    out = pl.pallas_call(
        kernel,
        out_shape=jax.ShapeDtypeStruct((B, H * W, Cout_p), out_dtype),
        grid_spec=pltpu.PrefetchScalarGridSpec(
            num_scalar_prefetch=0,
            grid=(B, nH),
            in_specs=[
                pl.BlockSpec((1, tH + 2 * pad, Wp, Cin),
                             lambda bi, hi: (bi * nH + hi, 0, 0, 0)),
                pl.BlockSpec((K * K * Cin, Cout_p), lambda bi, hi: (0, 0)),
                pl.BlockSpec((1, Cout_p), lambda bi, hi: (0, 0)),
            ],
            out_specs=pl.BlockSpec((1, tH * W, Cout_p), lambda bi, hi: (bi, hi, 0)),
        ),
        compiler_params=pltpu.CompilerParams(
            dimension_semantics=("parallel", "parallel"),
        ),
        cost_estimate=cost,
    )(x_tiles, w, b2)

    # (B, H*W, Cout_p) -> (B, H, W, Cout) -> NCHW
    out = out.reshape(B, H, W, Cout_p)[:, :, :, :Cout]
    return jnp.transpose(out, (0, 3, 1, 2))


def _reference(x_nchw, weight_oihw, bias):
    y = lax.conv_general_dilated(
        x_nchw, weight_oihw,
        window_strides=(1, 1), padding="SAME",
        dimension_numbers=("NCHW", "OIHW", "NCHW"),
    )
    y = y + bias[None, :, None, None]
    return jnp.maximum(y, 0.0)


if __name__ == "__main__":
    B, Cin, H, W = 2, 4, 16, 16
    Cout, K = 8, 3

    key = jax.random.PRNGKey(0)
    kx, kw, kb = jax.random.split(key, 3)
    x = jax.random.normal(kx, (B, Cin, H, W), dtype=jnp.float32)
    fan_in = Cin * K * K
    weight = jax.random.normal(kw, (Cout, Cin, K, K), dtype=jnp.float32) / jnp.sqrt(fan_in)
    bias = jax.random.normal(kb, (Cout,), dtype=jnp.float32) * 0.1

    out = conv_relu_pallas(x, weight, bias)
    out = jax.block_until_ready(out)

    ref = _reference(x, weight, bias)
    assert out.shape == (B, Cout, H, W)
    # bf16 MXU inputs with f32 accumulation -> slightly looser tolerance vs f32 reference.
    assert jnp.allclose(out, ref, atol=5e-2, rtol=5e-2), "mismatch vs reference conv"

    print("KERNEL_OK")
</pallas_src>

<mosaic_0001>
module attributes {stable_mosaic.version = 11 : i64} {
  func.func @_conv_relu_kernel(%arg0: i32, %arg1: i32, %arg2: memref<1x18x18x4xbf16, #tpu.memory_space<vmem>>, %arg3: memref<36x128xbf16, #tpu.memory_space<vmem>>, %arg4: memref<1x128xf32, #tpu.memory_space<vmem>>, %arg5: memref<1x256x128xf32, #tpu.memory_space<vmem>>) attributes {dimension_semantics = [#tpu.dimension_semantics<parallel>, #tpu.dimension_semantics<parallel>], iteration_bounds = array<i64: 2, 1>, scalar_prefetch = 0 : i64, scratch_operands = 0 : i64, tpu.core_type = #tpu.core_type<tc>, window_params = [{transform_indices = @transform_0, window_bounds = array<i64: 1, 18, 18, 4>}, {pipeline_mode = #tpu.pipeline_mode<synchronous>, transform_indices = @transform_1, window_bounds = array<i64: 36, 128>}, {pipeline_mode = #tpu.pipeline_mode<synchronous>, transform_indices = @transform_2, window_bounds = array<i64: 1, 128>}, {transform_indices = @transform_3, window_bounds = array<i64: 1, 256, 128>}]} {
    %c0 = arith.constant 0 : index
    %c0_0 = arith.constant 0 : index
    %c0_1 = arith.constant 0 : index
    %c0_2 = arith.constant 0 : index
    %0 = vector.load %arg2[%c0, %c0_0, %c0_1, %c0_2] : memref<1x18x18x4xbf16, #tpu.memory_space<vmem>>, vector<1x16x16x4xbf16>
    %1 = vector.shape_cast %0 : vector<1x16x16x4xbf16> to vector<16x16x4xbf16>
    %c0_3 = arith.constant 0 : index
    %c0_4 = arith.constant 0 : index
    %c1 = arith.constant 1 : index
    %c0_5 = arith.constant 0 : index
    %2 = vector.load %arg2[%c0_3, %c0_4, %c1, %c0_5] : memref<1x18x18x4xbf16, #tpu.memory_space<vmem>>, vector<1x16x16x4xbf16>
    %3 = vector.shape_cast %2 : vector<1x16x16x4xbf16> to vector<16x16x4xbf16>
    %c0_6 = arith.constant 0 : index
    %c0_7 = arith.constant 0 : index
    %c2 = arith.constant 2 : index
    %c0_8 = arith.constant 0 : index
    %4 = vector.load %arg2[%c0_6, %c0_7, %c2, %c0_8] : memref<1x18x18x4xbf16, #tpu.memory_space<vmem>>, vector<1x16x16x4xbf16>
    %5 = vector.shape_cast %4 : vector<1x16x16x4xbf16> to vector<16x16x4xbf16>
    %c0_9 = arith.constant 0 : index
    %c1_10 = arith.constant 1 : index
    %c0_11 = arith.constant 0 : index
    %c0_12 = arith.constant 0 : index
    %6 = vector.load %arg2[%c0_9, %c1_10, %c0_11, %c0_12] : memref<1x18x18x4xbf16, #tpu.memory_space<vmem>>, vector<1x16x16x4xbf16>
    %7 = vector.shape_cast %6 : vector<1x16x16x4xbf16> to vector<16x16x4xbf16>
    %c0_13 = arith.constant 0 : index
    %c1_14 = arith.constant 1 : index
    %c1_15 = arith.constant 1 : index
    %c0_16 = arith.constant 0 : index
    %8 = vector.load %arg2[%c0_13, %c1_14, %c1_15, %c0_16] : memref<1x18x18x4xbf16, #tpu.memory_space<vmem>>, vector<1x16x16x4xbf16>
    %9 = vector.shape_cast %8 : vector<1x16x16x4xbf16> to vector<16x16x4xbf16>
    %c0_17 = arith.constant 0 : index
    %c1_18 = arith.constant 1 : index
    %c2_19 = arith.constant 2 : index
    %c0_20 = arith.constant 0 : index
    %10 = vector.load %arg2[%c0_17, %c1_18, %c2_19, %c0_20] : memref<1x18x18x4xbf16, #tpu.memory_space<vmem>>, vector<1x16x16x4xbf16>
    %11 = vector.shape_cast %10 : vector<1x16x16x4xbf16> to vector<16x16x4xbf16>
    %c0_21 = arith.constant 0 : index
    %c2_22 = arith.constant 2 : index
    %c0_23 = arith.constant 0 : index
    %c0_24 = arith.constant 0 : index
    %12 = vector.load %arg2[%c0_21, %c2_22, %c0_23, %c0_24] : memref<1x18x18x4xbf16, #tpu.memory_space<vmem>>, vector<1x16x16x4xbf16>
    %13 = vector.shape_cast %12 : vector<1x16x16x4xbf16> to vector<16x16x4xbf16>
    %c0_25 = arith.constant 0 : index
    %c2_26 = arith.constant 2 : index
    %c1_27 = arith.constant 1 : index
    %c0_28 = arith.constant 0 : index
    %14 = vector.load %arg2[%c0_25, %c2_26, %c1_27, %c0_28] : memref<1x18x18x4xbf16, #tpu.memory_space<vmem>>, vector<1x16x16x4xbf16>
    %15 = vector.shape_cast %14 : vector<1x16x16x4xbf16> to vector<16x16x4xbf16>
    %c0_29 = arith.constant 0 : index
    %c2_30 = arith.constant 2 : index
    %c2_31 = arith.constant 2 : index
    %c0_32 = arith.constant 0 : index
    %16 = vector.load %arg2[%c0_29, %c2_30, %c2_31, %c0_32] : memref<1x18x18x4xbf16, #tpu.memory_space<vmem>>, vector<1x16x16x4xbf16>
    %17 = vector.shape_cast %16 : vector<1x16x16x4xbf16> to vector<16x16x4xbf16>
    %18 = tpu.concatenate %1, %3, %5, %7, %9, %11, %13, %15, %17 in 2 : vector<16x16x4xbf16>, vector<16x16x4xbf16>, vector<16x16x4xbf16>, vector<16x16x4xbf16>, vector<16x16x4xbf16>, vector<16x16x4xbf16>, vector<16x16x4xbf16>, vector<16x16x4xbf16>, vector<16x16x4xbf16> -> vector<16x16x36xbf16>
    %19 = vector.shape_cast %18 : vector<16x16x36xbf16> to vector<256x36xbf16>
    %c0_33 = arith.constant 0 : index
    %c0_34 = arith.constant 0 : index
    %20 = vector.load %arg3[%c0_33, %c0_34] : memref<36x128xbf16, #tpu.memory_space<vmem>>, vector<36x128xbf16>
    %cst = arith.constant dense<0.000000e+00> : vector<256x128xf32>
    %21 = tpu.matmul %19, %20, %cst {dimension_numbers = #tpu.dot_dimension_numbers<[1], [0], [0], [1], [0, 0, 1, 1], [], []>} : vector<256x36xbf16>, vector<36x128xbf16>, vector<256x128xf32> -> vector<256x128xf32>
    %c0_35 = arith.constant 0 : index
    %c0_36 = arith.constant 0 : index
    %22 = vector.load %arg4[%c0_35, %c0_36] : memref<1x128xf32, #tpu.memory_space<vmem>>, vector<1x128xf32>
    %23 = vector.broadcast %22 : vector<1x128xf32> to vector<256x128xf32>
    %24 = arith.addf %21, %23 : vector<256x128xf32>
    %cst_37 = arith.constant 0.000000e+00 : f32
    %25 = vector.broadcast %cst_37 : f32 to vector<256x128xf32>
    %26 = arith.maximumf %24, %25 : vector<256x128xf32>
    %c0_38 = arith.constant 0 : index
    %c0_39 = arith.constant 0 : index
    %c0_40 = arith.constant 0 : index
    %27 = vector.load %arg5[%c0_38, %c0_39, %c0_40] : memref<1x256x128xf32, #tpu.memory_space<vmem>>, vector<1x256x128xf32>
    %28 = vector.shape_cast %27 : vector<1x256x128xf32> to vector<256x128xf32>
    %29 = vector.shape_cast %26 : vector<256x128xf32> to vector<1x256x128xf32>
    tpu.vector_store %arg5[%c0_38, %c0_39, %c0_40], %29 {strides = array<i32>} : memref<1x256x128xf32, #tpu.memory_space<vmem>>, vector<1x256x128xf32>,
    return
  }
  func.func @transform_0(%arg0: i32, %arg1: i32) -> (i32, i32, i32, i32) {
    %c1_i32 = arith.constant 1 : i32
    %0 = arith.muli %arg0, %c1_i32 : i32
    %1 = arith.addi %0, %arg1 : i32
    %c0_i32 = arith.constant 0 : i32
    %c0_i32_0 = arith.constant 0 : i32
    %c0_i32_1 = arith.constant 0 : i32
    %c0_i32_2 = arith.constant 0 : i32
    return %1, %c0_i32, %c0_i32_0, %c0_i32_1 : i32, i32, i32, i32
  }
  func.func @transform_1(%arg0: i32, %arg1: i32) -> (i32, i32) {
    %c0_i32 = arith.constant 0 : i32
    %c0_i32_0 = arith.constant 0 : i32
    %c0_i32_1 = arith.constant 0 : i32
    return %c0_i32, %c0_i32_0 : i32, i32
  }
  func.func @transform_2(%arg0: i32, %arg1: i32) -> (i32, i32) {
    %c0_i32 = arith.constant 0 : i32
    %c0_i32_0 = arith.constant 0 : i32
    %c0_i32_1 = arith.constant 0 : i32
    return %c0_i32, %c0_i32_0 : i32, i32
  }
  func.func @transform_3(%arg0: i32, %arg1: i32) -> (i32, i32, i32) {
    %c0_i32 = arith.constant 0 : i32
    %c0_i32_0 = arith.constant 0 : i32
    return %arg0, %arg1, %c0_i32 : i32, i32, i32
  }
}

</mosaic_0001>

<llo_original>
// kernel: tpu_custom_call.1
$region0: #{tpu_custom_call.1}
  #allocation0 [shape = 'u32[]', space=smem, size = 0x4, offset = 0x4, fixed_abs, tag = 'smem constant byte address 0x4 - core index']
  #allocation1 [shape = 'u32[72,128]{1,0:T(1,128)}', space=vmem, size = 0x9000, scoped, tag = 'internal scratch']
  %s0 = inlined_call_operand.vmem [shape: bf16[2,18,18,4], index: 0, kind: input, shape index: {}]
  %s1 = inlined_call_operand.vmem [shape: bf16[36,128], index: 1, kind: input, shape index: {}]
  %s2 = inlined_call_operand.vmem [shape: f32[1,128], index: 2, kind: input, shape index: {}]
  %s3 = inlined_call_operand.hbm [shape: f32[2,256,128], index: 3, kind: output, shape index: {}]
  %s4 = sld [smem:[#allocation0]]
  $region45: #{tpu_custom_call.1} parent=0
    _
  %s6 = ssub.s32 1, %s4
  %s7 = scalar_select 0, %s6, %s4
  $region1: #{tpu_custom_call.1} parent=0
    #allocation2 [shape = 'u8[262144]{0}', space=vmem, size = 0x40000, scoped, tag = 'output window, operand 0']
    #allocation3 [shape = 's32[2]{0}', space=sflag, size = 0x8, scoped, tag = 'scoped memory for tpu_custom_call.1']
    %8 = vsyncpa [#allocation3], 0
    %s9 = scalar_lea.sflag [#allocation3], 1
    %10 = vsyncpa %s9, 0
    loop: start=0, step=1, limit=4
    $region2: #{tpu_custom_call.1} parent=1 // loop_pre_header
      _
    $region3: #{tpu_custom_call.1} parent=1 // loop_header
      %s12 = sphi 0, %s16
      %p13 = scmp.ge.s32.totalorder %s12, 4
      %s19 = sphi 0, %s31
      %s20 = sphi 0, %s27
      %s21 = sphi 0, %s19
      %s22 = sphi 0, %s20
      %s23 = sphi 0, %s21
      %s24 = sphi 0, %s22
      %s36 = sphi 0, %s38
      %s39 = sphi 0, %s36
      %s40 = sphi 0, %s39
      %s56 = sphi 0, %s40
      %s60 = sphi 0, %s60
      %s62 = sphi 0, %s60
      %s63 = sphi 0, %s62
      %s77 = sphi 0, %s63
      %s81 = sphi 0, %s81
      %s83 = sphi 0, %s81
      %s84 = sphi 0, %s83
      %s98 = sphi 0, %s84
      %s106 = sphi 0, %s108
      %s109 = sphi 0, %s106
      %s110 = sphi 0, %s109
      %s126 = sphi 0, %s110
    $region4: #{tpu_custom_call.1} parent=1 // loop_header_branch
      %15 = sbr.rel (%p13) target = $region8
    $region5: #{tpu_custom_call.1} parent=1 // loop_body
      %s17 = ssub.s32 %s12, 1
      %s18 = ssub.s32 %s12, 2
      %s25 = sadd.s32 1, %s20
      %p26 = scmp.ge.s32.totalorder %s25, 1
      %s27 = scalar_select %p26, 0, %s25
      %s28 = sadd.s32 1, %s19
      %s29 = scalar_select %p26, %s28, %s19
      %p30 = scmp.ge.s32.totalorder %s29, 2
      %s31 = scalar_select %p30, 0, %s29
      %s32 = sadd.s32 %s19, %s20
      %s33 = sadd.s32 %s31, %s27
      %s34 = ssub.s32 %s32, %s33
      %p35 = scmp.eq.s32.totalorder %s34, 0
      %s37 = sadd.s32 %s36, 1
      %s38 = scalar_select %p35, %s36, %s37
      %p41 = pneg %p35
      %p42 = scmp.eq.s32.totalorder %s12, 1
      %p43 = por %p41, %p42
      %p44 = scmp.ne.s32.totalorder %s36, %s39
      %p45 = scmp.eq.s32.totalorder %s12, 0
      %p46 = por %p44, %p45
      %p47 = scmp.ne.s32.totalorder %s36, %s39
      %p48 = scmp.eq.s32.totalorder %s17, 1
      %p49 = por %p47, %p48
      %p50 = scmp.ne.s32.totalorder %s39, %s40
      %p51 = scmp.eq.s32.totalorder %s17, 0
      %p52 = por %p50, %p51
      %p53 = scmp.ne.s32.totalorder %s39, %s40
      %p54 = scmp.eq.s32.totalorder %s18, 1
      %p55 = por %p53, %p54
      %p57 = scmp.ne.s32.totalorder %s40, %s56
      %p58 = scmp.eq.s32.totalorder %s18, 0
      %p59 = por %p57, %p58
      %s61 = sadd.s32 %s60, 1
      %p64 = scmp.eq.s32.totalorder %s12, 1
      %p65 = scmp.ne.s32.totalorder %s60, %s62
      %p66 = scmp.eq.s32.totalorder %s12, 0
      %p67 = por %p65, %p66
      %p68 = scmp.ne.s32.totalorder %s60, %s62
      %p69 = scmp.eq.s32.totalorder %s17, 1
      %p70 = por %p68, %p69
      %p71 = scmp.ne.s32.totalorder %s62, %s63
      %p72 = scmp.eq.s32.totalorder %s17, 0
      %p73 = por %p71, %p72
      %p74 = scmp.ne.s32.totalorder %s62, %s63
      %p75 = scmp.eq.s32.totalorder %s18, 1
      %p76 = por %p74, %p75
      %p78 = scmp.ne.s32.totalorder %s63, %s77
      %p79 = scmp.eq.s32.totalorder %s18, 0
      %p80 = por %p78, %p79
      %s82 = sadd.s32 %s81, 1
      %p85 = scmp.eq.s32.totalorder %s12, 1
      %p86 = scmp.ne.s32.totalorder %s81, %s83
      %p87 = scmp.eq.s32.totalorder %s12, 0
      %p88 = por %p86, %p87
      %p89 = scmp.ne.s32.totalorder %s81, %s83
      %p90 = scmp.eq.s32.totalorder %s17, 1
      %p91 = por %p89, %p90
      %p92 = scmp.ne.s32.totalorder %s83, %s84
      %p93 = scmp.eq.s32.totalorder %s17, 0
      %p94 = por %p92, %p93
      %p95 = scmp.ne.s32.totalorder %s83, %s84
      %p96 = scmp.eq.s32.totalorder %s18, 1
      %p97 = por %p95, %p96
      %p99 = scmp.ne.s32.totalorder %s84, %s98
      %p100 = scmp.eq.s32.totalorder %s18, 0
      %p101 = por %p99, %p100
      %s102 = ssub.s32 %s19, %s31
      %s103 = ssub.s32 %s20, %s27
      %s104 = sor.u32 %s102, %s103
      %p105 = scmp.eq.s32.totalorder %s104, 0
      %s107 = sadd.s32 %s106, 1
      %s108 = scalar_select %p105, %s106, %s107
      %p111 = pneg %p105
      %p112 = scmp.eq.s32.totalorder %s12, 1
      %p113 = por %p111, %p112
      %p114 = scmp.ne.s32.totalorder %s106, %s109
      %p115 = scmp.eq.s32.totalorder %s12, 0
      %p116 = por %p114, %p115
      %p117 = scmp.ne.s32.totalorder %s106, %s109
      %p118 = scmp.eq.s32.totalorder %s17, 1
      %p119 = por %p117, %p118
      %p120 = scmp.ne.s32.totalorder %s109, %s110
      %p121 = scmp.eq.s32.totalorder %s17, 0
      %p122 = por %p120, %p121
      %p123 = scmp.ne.s32.totalorder %s109, %s110
      %p124 = scmp.eq.s32.totalorder %s18, 1
      %p125 = por %p123, %p124
      %p127 = scmp.ne.s32.totalorder %s110, %s126
      %p128 = scmp.eq.s32.totalorder %s18, 0
      %p129 = por %p127, %p128
      %p130 = scmp.le.s32.totalorder 1, %s12
      %p131 = scmp.lt.s32.totalorder %s12, 3
      %p132 = pnand %p130, %p131
      %p133 = pneg %p132
      // Predicated region
      $region9: #{tpu_custom_call.1} parent=5 // pred_check
        _
      $region10: #{tpu_custom_call.1} parent=5 // pred_check_branch
        %135 = sbr.rel (%p132) target = $region12
      $region11: #{tpu_custom_call.1} parent=5 // pred_region
        %s136 = ssub.s32 %s12, 1
        // Predicated region
        $region13: #{tpu_custom_call.1} parent=11 // pred_check
          %p137 = pneg %p73
        $region14: #{tpu_custom_call.1} parent=11 // pred_check_branch
          %139 = sbr.rel (%p137) target = $region16
        $region15: #{tpu_custom_call.1} parent=11 // pred_region
          _
        $region16: #{tpu_custom_call.1} parent=11 // pred_fallthru
          _
        // Predicated region
        $region17: #{tpu_custom_call.1} parent=11 // pred_check
          %p140 = pneg %p94
        $region18: #{tpu_custom_call.1} parent=11 // pred_check_branch
          %142 = sbr.rel (%p140) target = $region20
        $region19: #{tpu_custom_call.1} parent=11 // pred_region
          _
        $region20: #{tpu_custom_call.1} parent=11 // pred_fallthru
          _
      $region12: #{tpu_custom_call.1} parent=5 // pred_fallthru
        _
      %p143 = scmp.lt.s32.totalorder %s12, 2
      // Predicated region
      $region21: #{tpu_custom_call.1} parent=5 // pred_check
        %p144 = pneg %p143
      $region22: #{tpu_custom_call.1} parent=5 // pred_check_branch
        %146 = sbr.rel (%p144) target = $region24
      $region23: #{tpu_custom_call.1} parent=5 // pred_region
        // Predicated region
        $region25: #{tpu_custom_call.1} parent=23 // pred_check
          %p147 = pneg %p46
        $region26: #{tpu_custom_call.1} parent=23 // pred_check_branch
          %149 = sbr.rel (%p147) target = $region28
        $region27: #{tpu_custom_call.1} parent=23 // pred_region
          %s150 = sadd.s32 %s19, %s20
          %p151 = scmp.lt.s32.totalorder %s150, 1
          %s152 = scalar_select %p151, %s150, 1
          %s153 = smul.addr %s152, 54
          %s154 = smul.addr %s153, 4
          %s155 = scalar_lea.vmem %s0, %s154
          %s156 = sadd.s32 %s19, %s20
        $region28: #{tpu_custom_call.1} parent=23 // pred_fallthru
          _
      $region24: #{tpu_custom_call.1} parent=5 // pred_fallthru
        _
      %p157 = scmp.le.s32.totalorder 1, %s12
      %p158 = scmp.lt.s32.totalorder %s12, 3
      %p159 = pnand %p157, %p158
      %p160 = pneg %p159
      // Predicated region
      $region29: #{tpu_custom_call.1} parent=5 // pred_check
        _
      $region30: #{tpu_custom_call.1} parent=5 // pred_check_branch
        %162 = sbr.rel (%p159) target = $region32
      $region31: #{tpu_custom_call.1} parent=5 // pred_region
        %s163 = ssub.s32 %s12, 1
        %s164 = sadd.s32 %s21, %s22
        %p165 = scmp.lt.s32.totalorder %s164, 1
        %s166 = scalar_select %p165, %s164, 1
        %s167 = smul.addr %s166, 54
        %s168 = smul.addr %s167, 4
        %s169 = scalar_lea.vmem %s0, %s168
        %p170 = pneg %p52
        %p171 = pneg %p49
        %p172 = pneg %p73
        %p173 = pneg %p70
        %p174 = pneg %p94
        %p175 = pneg %p91
        %p176 = pneg %p122
        %p177 = pneg %p119
        %s178 = sand.u32 %s109, 1
        %s179 = scalar_lea.sflag [#allocation3], %s178
        %s180 = sand.u32 %s109, 1
        %s181 = smul.addr %s180, 256
        %s182 = scalar_lea.vmem [#allocation2], %s181
        %s183 = sadd.s32 %s21, %s22
        %p184 = scmp.lt.s32.totalorder %s183, 1
        %s185 = scalar_select %p184, %s183, 1
        %s186 = smul.addr %s185, 54
        %s187 = smul.addr %s186, 4
        %s188 = scalar_lea.vmem %s0, %s187
        %s189 = sadd.s32 %s21, %s22
        %s190 = smul.u32 32, %s22
        %v192 = vld [vmem:[%s188] sm:$0xf]
        %v193 = vld [vmem:[%s188 + $0x4] sm:$0xf]
        %v194 = vld [vmem:[%s188 + $0xc] sm:$0xf]
        %v195 = vld [vmem:[%s188 + $0x10] sm:$0xf]
        %v196 = vld [vmem:[%s188 + $0x18] sm:$0xf]
        %v197 = vld [vmem:[%s188 + $0x1c] sm:$0xf]
        %v198 = vld [vmem:[%s188 + $0x24] sm:$0xf]
        %v199 = vld [vmem:[%s188 + $0x28] sm:$0xf]
        %v200 = vld [vmem:[%s188 + $0x30] sm:$0xf]
        %v201 = vld [vmem:[%s188 + $0x34] sm:$0xf]
        %v202 = vld [vmem:[%s188 + $0x3c] sm:$0xf]
        %v203 = vld [vmem:[%s188 + $0x40] sm:$0xf]
        %v204 = vld [vmem:[%s188 + $0x48] sm:$0xf]
        %v205 = vld [vmem:[%s188 + $0x4c] sm:$0xf]
        %v206 = vld [vmem:[%s188 + $0x54] sm:$0xf]
        %v207 = vld [vmem:[%s188 + $0x58] sm:$0xf]
        %v208 = vld [vmem:[%s188 + $0x60] sm:$0xf]
        %v209 = vld [vmem:[%s188 + $0x64] sm:$0xf]
        %v210 = vld [vmem:[%s188 + $0x6c] sm:$0xf]
        %v211 = vld [vmem:[%s188 + $0x70] sm:$0xf]
        %v212 = vld [vmem:[%s188 + $0x78] sm:$0xf]
        %v213 = vld [vmem:[%s188 + $0x7c] sm:$0xf]
        %v214 = vld [vmem:[%s188 + $0x84] sm:$0xf]
        %v215 = vld [vmem:[%s188 + $0x88] sm:$0xf]
        %v216 = vld [vmem:[%s188 + $0x90] sm:$0xf]
        %v217 = vld [vmem:[%s188 + $0x94] sm:$0xf]
        %v218 = vld [vmem:[%s188 + $0x9c] sm:$0xf]
        %v219 = vld [vmem:[%s188 + $0xa0] sm:$0xf]
        %v220 = vld [vmem:[%s188 + $0xa8] sm:$0xf]
        %v221 = vld [vmem:[%s188 + $0xac] sm:$0xf]
        %v222 = vld [vmem:[%s188 + $0xb4] sm:$0xf]
        %v223 = vld [vmem:[%s188 + $0xb8] sm:$0xf]
        %v224 = vld [vmem:[%s188 + $0x8] sm:$0x1]
        %v225 = vld [vmem:[%s188 + $0x14] sm:$0x1]
        %v226 = vld [vmem:[%s188 + $0x20] sm:$0x1]
        %v227 = vld [vmem:[%s188 + $0x2c] sm:$0x1]
        %v228 = vld [vmem:[%s188 + $0x38] sm:$0x1]
        %v229 = vld [vmem:[%s188 + $0x44] sm:$0x1]
        %v230 = vld [vmem:[%s188 + $0x50] sm:$0x1]
        %v231 = vld [vmem:[%s188 + $0x5c] sm:$0x1]
        %v232 = vld [vmem:[%s188 + $0x68] sm:$0x1]
        %v233 = vld [vmem:[%s188 + $0x74] sm:$0x1]
        %v234 = vld [vmem:[%s188 + $0x80] sm:$0x1]
        %v235 = vld [vmem:[%s188 + $0x8c] sm:$0x1]
        %v236 = vld [vmem:[%s188 + $0x98] sm:$0x1]
        %v237 = vld [vmem:[%s188 + $0xa4] sm:$0x1]
        %v238 = vld [vmem:[%s188 + $0xb0] sm:$0x1]
        %v239 = vld [vmem:[%s188 + $0xbc] sm:$0x1]
        %v240 = vld [vmem:[%s188] sm:$0xe]
        %v241 = vld [vmem:[%s188 + $0xc] sm:$0xe]
        %v242 = vld [vmem:[%s188 + $0x18] sm:$0xe]
        %v243 = vld [vmem:[%s188 + $0x24] sm:$0xe]
        %v244 = vld [vmem:[%s188 + $0x30] sm:$0xe]
        %v245 = vld [vmem:[%s188 + $0x3c] sm:$0xe]
        %v246 = vld [vmem:[%s188 + $0x48] sm:$0xe]
        %v247 = vld [vmem:[%s188 + $0x54] sm:$0xe]
        %v248 = vld [vmem:[%s188 + $0x60] sm:$0xe]
        %v249 = vld [vmem:[%s188 + $0x6c] sm:$0xe]
        %v250 = vld [vmem:[%s188 + $0x78] sm:$0xe]
        %v251 = vld [vmem:[%s188 + $0x84] sm:$0xe]
        %v252 = vld [vmem:[%s188 + $0x90] sm:$0xe]
        %v253 = vld [vmem:[%s188 + $0x9c] sm:$0xe]
        %v254 = vld [vmem:[%s188 + $0xa8] sm:$0xe]
        %v255 = vld [vmem:[%s188 + $0xb4] sm:$0xe]
        %s256 = scalar_lea.vmem %s188, 12
        %v257 = vld [vmem:[%s256] sm:$0xf]
        %v258 = vld [vmem:[%s256 + $0x4] sm:$0xf]
        %v259 = vld [vmem:[%s256 + $0xc] sm:$0xf]
        %v260 = vld [vmem:[%s256 + $0x10] sm:$0xf]
        %v261 = vld [vmem:[%s256 + $0x18] sm:$0xf]
        %v262 = vld [vmem:[%s256 + $0x1c] sm:$0xf]
        %v263 = vld [vmem:[%s256 + $0x24] sm:$0xf]
        %v264 = vld [vmem:[%s256 + $0x28] sm:$0xf]
        %v265 = vld [vmem:[%s256 + $0x30] sm:$0xf]
        %v266 = vld [vmem:[%s256 + $0x34] sm:$0xf]
        %v267 = vld [vmem:[%s256 + $0x3c] sm:$0xf]
        %v268 = vld [vmem:[%s256 + $0x40] sm:$0xf]
        %v269 = vld [vmem:[%s256 + $0x48] sm:$0xf]
        %v270 = vld [vmem:[%s256 + $0x4c] sm:$0xf]
        %v271 = vld [vmem:[%s256 + $0x54] sm:$0xf]
        %v272 = vld [vmem:[%s256 + $0x58] sm:$0xf]
        %v273 = vld [vmem:[%s256 + $0x60] sm:$0xf]
        %v274 = vld [vmem:[%s256 + $0x64] sm:$0xf]
        %v275 = vld [vmem:[%s256 + $0x6c] sm:$0xf]
        %v276 = vld [vmem:[%s256 + $0x70] sm:$0xf]
        %v277 = vld [vmem:[%s256 + $0x78] sm:$0xf]
        %v278 = vld [vmem:[%s256 + $0x7c] sm:$0xf]
        %v279 = vld [vmem:[%s256 + $0x84] sm:$0xf]
        %v280 = vld [vmem:[%s256 + $0x88] sm:$0xf]
        %v281 = vld [vmem:[%s256 + $0x90] sm:$0xf]
        %v282 = vld [vmem:[%s256 + $0x94] sm:$0xf]
        %v283 = vld [vmem:[%s256 + $0x9c] sm:$0xf]
        %v284 = vld [vmem:[%s256 + $0xa0] sm:$0xf]
        %v285 = vld [vmem:[%s256 + $0xa8] sm:$0xf]
        %v286 = vld [vmem:[%s256 + $0xac] sm:$0xf]
        %v287 = vld [vmem:[%s256 + $0xb4] sm:$0xf]
        %v288 = vld [vmem:[%s256 + $0xb8] sm:$0xf]
        %v289 = vld [vmem:[%s256 + $0x8] sm:$0x1]
        %v290 = vld [vmem:[%s256 + $0x14] sm:$0x1]
        %v291 = vld [vmem:[%s256 + $0x20] sm:$0x1]
        %v292 = vld [vmem:[%s256 + $0x2c] sm:$0x1]
        %v293 = vld [vmem:[%s256 + $0x38] sm:$0x1]
        %v294 = vld [vmem:[%s256 + $0x44] sm:$0x1]
        %v295 = vld [vmem:[%s256 + $0x50] sm:$0x1]
        %v296 = vld [vmem:[%s256 + $0x5c] sm:$0x1]
        %v297 = vld [vmem:[%s256 + $0x68] sm:$0x1]
        %v298 = vld [vmem:[%s256 + $0x74] sm:$0x1]
        %v299 = vld [vmem:[%s256 + $0x80] sm:$0x1]
        %v300 = vld [vmem:[%s256 + $0x8c] sm:$0x1]
        %v301 = vld [vmem:[%s256 + $0x98] sm:$0x1]
        %v302 = vld [vmem:[%s256 + $0xa4] sm:$0x1]
        %v303 = vld [vmem:[%s256 + $0xb0] sm:$0x1]
        %v304 = vld [vmem:[%s256 + $0xbc] sm:$0x1]
        %v305 = vld [vmem:[%s256] sm:$0xe]
        %v306 = vld [vmem:[%s256 + $0xc] sm:$0xe]
        %v307 = vld [vmem:[%s256 + $0x18] sm:$0xe]
        %v308 = vld [vmem:[%s256 + $0x24] sm:$0xe]
        %v309 = vld [vmem:[%s256 + $0x30] sm:$0xe]
        %v310 = vld [vmem:[%s256 + $0x3c] sm:$0xe]
        %v311 = vld [vmem:[%s256 + $0x48] sm:$0xe]
        %v312 = vld [vmem:[%s256 + $0x54] sm:$0xe]
        %v313 = vld [vmem:[%s256 + $0x60] sm:$0xe]
        %v314 = vld [vmem:[%s256 + $0x6c] sm:$0xe]
        %v315 = vld [vmem:[%s256 + $0x78] sm:$0xe]
        %v316 = vld [vmem:[%s256 + $0x84] sm:$0xe]
        %v317 = vld [vmem:[%s256 + $0x90] sm:$0xe]
        %v318 = vld [vmem:[%s256 + $0x9c] sm:$0xe]
        %v319 = vld [vmem:[%s256 + $0xa8] sm:$0xe]
        %v320 = vld [vmem:[%s256 + $0xb4] sm:$0xe]
        %s321 = scalar_lea.vmem %s188, 24
        %v322 = vld [vmem:[%s321] sm:$0xf]
        %v323 = vld [vmem:[%s321 + $0x4] sm:$0xf]
        %v324 = vld [vmem:[%s321 + $0xc] sm:$0xf]
        %v325 = vld [vmem:[%s321 + $0x10] sm:$0xf]
        %v326 = vld [vmem:[%s321 + $0x18] sm:$0xf]
        %v327 = vld [vmem:[%s321 + $0x1c] sm:$0xf]
        %v328 = vld [vmem:[%s321 + $0x24] sm:$0xf]
        %v329 = vld [vmem:[%s321 + $0x28] sm:$0xf]
        %v330 = vld [vmem:[%s321 + $0x30] sm:$0xf]
        %v331 = vld [vmem:[%s321 + $0x34] sm:$0xf]
        %v332 = vld [vmem:[%s321 + $0x3c] sm:$0xf]
        %v333 = vld [vmem:[%s321 + $0x40] sm:$0xf]
        %v334 = vld [vmem:[%s321 + $0x48] sm:$0xf]
        %v335 = vld [vmem:[%s321 + $0x4c] sm:$0xf]
        %v336 = vld [vmem:[%s321 + $0x54] sm:$0xf]
        %v337 = vld [vmem:[%s321 + $0x58] sm:$0xf]
        %v338 = vld [vmem:[%s321 + $0x60] sm:$0xf]
        %v339 = vld [vmem:[%s321 + $0x64] sm:$0xf]
        %v340 = vld [vmem:[%s321 + $0x6c] sm:$0xf]
        %v341 = vld [vmem:[%s321 + $0x70] sm:$0xf]
        %v342 = vld [vmem:[%s321 + $0x78] sm:$0xf]
        %v343 = vld [vmem:[%s321 + $0x7c] sm:$0xf]
        %v344 = vld [vmem:[%s321 + $0x84] sm:$0xf]
        %v345 = vld [vmem:[%s321 + $0x88] sm:$0xf]
        %v346 = vld [vmem:[%s321 + $0x90] sm:$0xf]
        %v347 = vld [vmem:[%s321 + $0x94] sm:$0xf]
        %v348 = vld [vmem:[%s321 + $0x9c] sm:$0xf]
        %v349 = vld [vmem:[%s321 + $0xa0] sm:$0xf]
        %v350 = vld [vmem:[%s321 + $0xa8] sm:$0xf]
        %v351 = vld [vmem:[%s321 + $0xac] sm:$0xf]
        %v352 = vld [vmem:[%s321 + $0xb4] sm:$0xf]
        %v353 = vld [vmem:[%s321 + $0xb8] sm:$0xf]
        %v354 = vld [vmem:[%s321 + $0x8] sm:$0x1]
        %v355 = vld [vmem:[%s321 + $0x14] sm:$0x1]
        %v356 = vld [vmem:[%s321 + $0x20] sm:$0x1]
        %v357 = vld [vmem:[%s321 + $0x2c] sm:$0x1]
        %v358 = vld [vmem:[%s321 + $0x38] sm:$0x1]
        %v359 = vld [vmem:[%s321 + $0x44] sm:$0x1]
        %v360 = vld [vmem:[%s321 + $0x50] sm:$0x1]
        %v361 = vld [vmem:[%s321 + $0x5c] sm:$0x1]
        %v362 = vld [vmem:[%s321 + $0x68] sm:$0x1]
        %v363 = vld [vmem:[%s321 + $0x74] sm:$0x1]
        %v364 = vld [vmem:[%s321 + $0x80] sm:$0x1]
        %v365 = vld [vmem:[%s321 + $0x8c] sm:$0x1]
        %v366 = vld [vmem:[%s321 + $0x98] sm:$0x1]
        %v367 = vld [vmem:[%s321 + $0xa4] sm:$0x1]
        %v368 = vld [vmem:[%s321 + $0xb0] sm:$0x1]
        %v369 = vld [vmem:[%s321 + $0xbc] sm:$0x1]
        %v370 = vld [vmem:[%s321] sm:$0xe]
        %v371 = vld [vmem:[%s321 + $0xc] sm:$0xe]
        %v372 = vld [vmem:[%s321 + $0x18] sm:$0xe]
        %v373 = vld [vmem:[%s321 + $0x24] sm:$0xe]
        %v374 = vld [vmem:[%s321 + $0x30] sm:$0xe]
        %v375 = vld [vmem:[%s321 + $0x3c] sm:$0xe]
        %v376 = vld [vmem:[%s321 + $0x48] sm:$0xe]
        %v377 = vld [vmem:[%s321 + $0x54] sm:$0xe]
        %v378 = vld [vmem:[%s321 + $0x60] sm:$0xe]
        %v379 = vld [vmem:[%s321 + $0x6c] sm:$0xe]
        %v380 = vld [vmem:[%s321 + $0x78] sm:$0xe]
        %v381 = vld [vmem:[%s321 + $0x84] sm:$0xe]
        %v382 = vld [vmem:[%s321 + $0x90] sm:$0xe]
        %v383 = vld [vmem:[%s321 + $0x9c] sm:$0xe]
        %v384 = vld [vmem:[%s321 + $0xa8] sm:$0xe]
        %v385 = vld [vmem:[%s321 + $0xb4] sm:$0xe]
        %v418 = vunpack.c.l.b16 %v192
        %v419 = vunpack.c.l.b16 %v193
        %v420 = vunpack.c.l.b16 %v194
        %v421 = vunpack.c.l.b16 %v195
        %v422 = vunpack.c.l.b16 %v196
        %v423 = vunpack.c.l.b16 %v197
        %v424 = vunpack.c.l.b16 %v198
        %v425 = vunpack.c.l.b16 %v199
        %v426 = vunpack.c.l.b16 %v200
        %v427 = vunpack.c.l.b16 %v201
        %v428 = vunpack.c.l.b16 %v202
        %v429 = vunpack.c.l.b16 %v203
        %v430 = vunpack.c.l.b16 %v204
        %v431 = vunpack.c.l.b16 %v205
        %v432 = vunpack.c.l.b16 %v206
        %v433 = vunpack.c.l.b16 %v207
        %v434 = vunpack.c.l.b16 %v208
        %v435 = vunpack.c.l.b16 %v209
        %v436 = vunpack.c.l.b16 %v210
        %v437 = vunpack.c.l.b16 %v211
        %v438 = vunpack.c.l.b16 %v212
        %v439 = vunpack.c.l.b16 %v213
        %v440 = vunpack.c.l.b16 %v214
        %v441 = vunpack.c.l.b16 %v215
        %v442 = vunpack.c.l.b16 %v216
        %v443 = vunpack.c.l.b16 %v217
        %v444 = vunpack.c.l.b16 %v218
        %v445 = vunpack.c.l.b16 %v219
        %v446 = vunpack.c.l.b16 %v220
        %v447 = vunpack.c.l.b16 %v221
        %v448 = vunpack.c.l.b16 %v222
        %v449 = vunpack.c.l.b16 %v223
        %v450 = vpack.c.b16 %v419, %v418
        %v451 = vpack.c.b16 %v421, %v420
        %v452 = vpack.c.b16 %v423, %v422
        %v453 = vpack.c.b16 %v425, %v424
        %v454 = vpack.c.b16 %v427, %v426
        %v455 = vpack.c.b16 %v429, %v428
        %v456 = vpack.c.b16 %v431, %v430
        %v457 = vpack.c.b16 %v433, %v432
        %v458 = vpack.c.b16 %v435, %v434
        %v459 = vpack.c.b16 %v437, %v436
        %v460 = vpack.c.b16 %v439, %v438
        %v461 = vpack.c.b16 %v441, %v440
        %v462 = vpack.c.b16 %v443, %v442
        %v463 = vpack.c.b16 %v445, %v444
        %v464 = vpack.c.b16 %v447, %v446
        %v465 = vpack.c.b16 %v449, %v448
        %v482 = vunpack.c.l.b16 %v224
        %v483 = vunpack.c.l.b16 %v225
        %v484 = vunpack.c.l.b16 %v226
        %v485 = vunpack.c.l.b16 %v227
        %v486 = vunpack.c.l.b16 %v228
        %v487 = vunpack.c.l.b16 %v229
        %v488 = vunpack.c.l.b16 %v230
        %v489 = vunpack.c.l.b16 %v231
        %v490 = vunpack.c.l.b16 %v232
        %v491 = vunpack.c.l.b16 %v233
        %v492 = vunpack.c.l.b16 %v234
        %v493 = vunpack.c.l.b16 %v235
        %v494 = vunpack.c.l.b16 %v236
        %v495 = vunpack.c.l.b16 %v237
        %v496 = vunpack.c.l.b16 %v238
        %v497 = vunpack.c.l.b16 %v239
        %v498 = vpack.c.b16 %v482, %v482
        %v499 = vpack.c.b16 %v483, %v483
        %v500 = vpack.c.b16 %v484, %v484
        %v501 = vpack.c.b16 %v485, %v485
        %v502 = vpack.c.b16 %v486, %v486
        %v503 = vpack.c.b16 %v487, %v487
        %v504 = vpack.c.b16 %v488, %v488
        %v505 = vpack.c.b16 %v489, %v489
        %v506 = vpack.c.b16 %v490, %v490
        %v507 = vpack.c.b16 %v491, %v491
        %v508 = vpack.c.b16 %v492, %v492
        %v509 = vpack.c.b16 %v493, %v493
        %v510 = vpack.c.b16 %v494, %v494
        %v511 = vpack.c.b16 %v495, %v495
        %v512 = vpack.c.b16 %v496, %v496
        %v513 = vpack.c.b16 %v497, %v497
        %vm514 = vsmask.f32 7424
        %v516 = vshrl.u32 %v450, 16
        %v518 = vshll.u32 %v450, 16
        %v520 = vrot.slane %v518, 1
        %v521 = vor.u32 %v516, %v520
        %v523 = vshll.u32 %v498, 16
        %v525 = vrot.slane %v523, 1
        %v526 = vsel %vm514, %v521, %v525
        %v528 = vshrl.u32 %v451, 16
        %v530 = vshll.u32 %v451, 16
        %v532 = vrot.slane %v530, 1
        %v533 = vor.u32 %v528, %v532
        %v535 = vshll.u32 %v499, 16
        %v537 = vrot.slane %v535, 1
        %v538 = vsel %vm514, %v533, %v537
        %v540 = vshrl.u32 %v452, 16
        %v542 = vshll.u32 %v452, 16
        %v544 = vrot.slane %v542, 1
        %v545 = vor.u32 %v540, %v544
        %v547 = vshll.u32 %v500, 16
        %v549 = vrot.slane %v547, 1
        %v550 = vsel %vm514, %v545, %v549
        %v552 = vshrl.u32 %v453, 16
        %v554 = vshll.u32 %v453, 16
        %v556 = vrot.slane %v554, 1
        %v557 = vor.u32 %v552, %v556
        %v559 = vshll.u32 %v501, 16
        %v561 = vrot.slane %v559, 1
        %v562 = vsel %vm514, %v557, %v561
        %v564 = vshrl.u32 %v454, 16
        %v566 = vshll.u32 %v454, 16
        %v568 = vrot.slane %v566, 1
        %v569 = vor.u32 %v564, %v568
        %v571 = vshll.u32 %v502, 16
        %v573 = vrot.slane %v571, 1
        %v574 = vsel %vm514, %v569, %v573
        %v576 = vshrl.u32 %v455, 16
        %v578 = vshll.u32 %v455, 16
        %v580 = vrot.slane %v578, 1
        %v581 = vor.u32 %v576, %v580
        %v583 = vshll.u32 %v503, 16
        %v585 = vrot.slane %v583, 1
        %v586 = vsel %vm514, %v581, %v585
        %v588 = vshrl.u32 %v456, 16
        %v590 = vshll.u32 %v456, 16
        %v592 = vrot.slane %v590, 1
        %v593 = vor.u32 %v588, %v592
        %v595 = vshll.u32 %v504, 16
        %v597 = vrot.slane %v595, 1
        %v598 = vsel %vm514, %v593, %v597
        %v600 = vshrl.u32 %v457, 16
        %v602 = vshll.u32 %v457, 16
        %v604 = vrot.slane %v602, 1
        %v605 = vor.u32 %v600, %v604
        %v607 = vshll.u32 %v505, 16
        %v609 = vrot.slane %v607, 1
        %v610 = vsel %vm514, %v605, %v609
        %v612 = vshrl.u32 %v458, 16
        %v614 = vshll.u32 %v458, 16
        %v616 = vrot.slane %v614, 1
        %v617 = vor.u32 %v612, %v616
        %v619 = vshll.u32 %v506, 16
        %v621 = vrot.slane %v619, 1
        %v622 = vsel %vm514, %v617, %v621
        %v624 = vshrl.u32 %v459, 16
        %v626 = vshll.u32 %v459, 16
        %v628 = vrot.slane %v626, 1
        %v629 = vor.u32 %v624, %v628
        %v631 = vshll.u32 %v507, 16
        %v633 = vrot.slane %v631, 1
        %v634 = vsel %vm514, %v629, %v633
        %v636 = vshrl.u32 %v460, 16
        %v638 = vshll.u32 %v460, 16
        %v640 = vrot.slane %v638, 1
        %v641 = vor.u32 %v636, %v640
        %v643 = vshll.u32 %v508, 16
        %v645 = vrot.slane %v643, 1
        %v646 = vsel %vm514, %v641, %v645
        %v648 = vshrl.u32 %v461, 16
        %v650 = vshll.u32 %v461, 16
        %v652 = vrot.slane %v650, 1
        %v653 = vor.u32 %v648, %v652
        %v655 = vshll.u32 %v509, 16
        %v657 = vrot.slane %v655, 1
        %v658 = vsel %vm514, %v653, %v657
        %v660 = vshrl.u32 %v462, 16
        %v662 = vshll.u32 %v462, 16
        %v664 = vrot.slane %v662, 1
        %v665 = vor.u32 %v660, %v664
        %v667 = vshll.u32 %v510, 16
        %v669 = vrot.slane %v667, 1
        %v670 = vsel %vm514, %v665, %v669
        %v672 = vshrl.u32 %v463, 16
        %v674 = vshll.u32 %v463, 16
        %v676 = vrot.slane %v674, 1
        %v677 = vor.u32 %v672, %v676
        %v679 = vshll.u32 %v511, 16
        %v681 = vrot.slane %v679, 1
        %v682 = vsel %vm514, %v677, %v681
        %v684 = vshrl.u32 %v464, 16
        %v686 = vshll.u32 %v464, 16
        %v688 = vrot.slane %v686, 1
        %v689 = vor.u32 %v684, %v688
        %v691 = vshll.u32 %v512, 16
        %v693 = vrot.slane %v691, 1
        %v694 = vsel %vm514, %v689, %v693
        %v696 = vshrl.u32 %v465, 16
        %v698 = vshll.u32 %v465, 16
        %v700 = vrot.slane %v698, 1
        %v701 = vor.u32 %v696, %v700
        %v703 = vshll.u32 %v513, 16
        %v705 = vrot.slane %v703, 1
        %v706 = vsel %vm514, %v701, %v705
        %707 = vrot.lane.b32.xlu0 %v526, 4
        %v708 = vpop.permute.xlu0 %707
        %709 = vrot.lane.b32.xlu0 %v538, 4
        %v710 = vpop.permute.xlu0 %709
        %711 = vrot.lane.b32.xlu0 %v550, 4
        %v712 = vpop.permute.xlu0 %711
        %713 = vrot.lane.b32.xlu0 %v562, 4
        %v714 = vpop.permute.xlu0 %713
        %715 = vrot.lane.b32.xlu0 %v574, 4
        %v716 = vpop.permute.xlu0 %715
        %717 = vrot.lane.b32.xlu0 %v586, 4
        %v718 = vpop.permute.xlu0 %717
        %719 = vrot.lane.b32.xlu0 %v598, 4
        %v720 = vpop.permute.xlu0 %719
        %721 = vrot.lane.b32.xlu0 %v610, 4
        %v722 = vpop.permute.xlu0 %721
        %723 = vrot.lane.b32.xlu0 %v622, 4
        %v724 = vpop.permute.xlu0 %723
        %725 = vrot.lane.b32.xlu0 %v634, 4
        %v726 = vpop.permute.xlu0 %725
        %727 = vrot.lane.b32.xlu0 %v646, 4
        %v728 = vpop.permute.xlu0 %727
        %729 = vrot.lane.b32.xlu0 %v658, 4
        %v730 = vpop.permute.xlu0 %729
        %731 = vrot.lane.b32.xlu0 %v670, 4
        %v732 = vpop.permute.xlu0 %731
        %733 = vrot.lane.b32.xlu0 %v682, 4
        %v734 = vpop.permute.xlu0 %733
        %735 = vrot.lane.b32.xlu0 %v694, 4
        %v736 = vpop.permute.xlu0 %735
        %737 = vrot.lane.b32.xlu0 %v706, 4
        %v738 = vpop.permute.xlu0 %737
        %v755 = vunpack.c.l.b16 %v240
        %v756 = vunpack.c.l.b16 %v241
        %v757 = vunpack.c.l.b16 %v242
        %v758 = vunpack.c.l.b16 %v243
        %v759 = vunpack.c.l.b16 %v244
        %v760 = vunpack.c.l.b16 %v245
        %v761 = vunpack.c.l.b16 %v246
        %v762 = vunpack.c.l.b16 %v247
        %v763 = vunpack.c.l.b16 %v248
        %v764 = vunpack.c.l.b16 %v249
        %v765 = vunpack.c.l.b16 %v250
        %v766 = vunpack.c.l.b16 %v251
        %v767 = vunpack.c.l.b16 %v252
        %v768 = vunpack.c.l.b16 %v253
        %v769 = vunpack.c.l.b16 %v254
        %v770 = vunpack.c.l.b16 %v255
        %v771 = vpack.c.b16 %v419, %v755
        %v772 = vpack.c.b16 %v421, %v756
        %v773 = vpack.c.b16 %v423, %v757
        %v774 = vpack.c.b16 %v425, %v758
        %v775 = vpack.c.b16 %v427, %v759
        %v776 = vpack.c.b16 %v429, %v760
        %v777 = vpack.c.b16 %v431, %v761
        %v778 = vpack.c.b16 %v433, %v762
        %v779 = vpack.c.b16 %v435, %v763
        %v780 = vpack.c.b16 %v437, %v764
        %v781 = vpack.c.b16 %v439, %v765
        %v782 = vpack.c.b16 %v441, %v766
        %v783 = vpack.c.b16 %v443, %v767
        %v784 = vpack.c.b16 %v445, %v768
        %v785 = vpack.c.b16 %v447, %v769
        %v786 = vpack.c.b16 %v449, %v770
        %vm787 = vcmask 1046528
        %v788 = vrot.slane %v771, 1
        %v789 = vrot.slane %v498, 1
        %v790 = vsel %vm787, %v788, %v789
        %v791 = vrot.slane %v772, 1
        %v792 = vrot.slane %v499, 1
        %v793 = vsel %vm787, %v791, %v792
        %v794 = vrot.slane %v773, 1
        %v795 = vrot.slane %v500, 1
        %v796 = vsel %vm787, %v794, %v795
        %v797 = vrot.slane %v774, 1
        %v798 = vrot.slane %v501, 1
        %v799 = vsel %vm787, %v797, %v798
        %v800 = vrot.slane %v775, 1
        %v801 = vrot.slane %v502, 1
        %v802 = vsel %vm787, %v800, %v801
        %v803 = vrot.slane %v776, 1
        %v804 = vrot.slane %v503, 1
        %v805 = vsel %vm787, %v803, %v804
        %v806 = vrot.slane %v777, 1
        %v807 = vrot.slane %v504, 1
        %v808 = vsel %vm787, %v806, %v807
        %v809 = vrot.slane %v778, 1
        %v810 = vrot.slane %v505, 1
        %v811 = vsel %vm787, %v809, %v810
        %v812 = vrot.slane %v779, 1
        %v813 = vrot.slane %v506, 1
        %v814 = vsel %vm787, %v812, %v813
        %v815 = vrot.slane %v780, 1
        %v816 = vrot.slane %v507, 1
        %v817 = vsel %vm787, %v815, %v816
        %v818 = vrot.slane %v781, 1
        %v819 = vrot.slane %v508, 1
        %v820 = vsel %vm787, %v818, %v819
        %v821 = vrot.slane %v782, 1
        %v822 = vrot.slane %v509, 1
        %v823 = vsel %vm787, %v821, %v822
        %v824 = vrot.slane %v783, 1
        %v825 = vrot.slane %v510, 1
        %v826 = vsel %vm787, %v824, %v825
        %v827 = vrot.slane %v784, 1
        %v828 = vrot.slane %v511, 1
        %v829 = vsel %vm787, %v827, %v828
        %v830 = vrot.slane %v785, 1
        %v831 = vrot.slane %v512, 1
        %v832 = vsel %vm787, %v830, %v831
        %v833 = vrot.slane %v786, 1
        %v834 = vrot.slane %v513, 1
        %v835 = vsel %vm787, %v833, %v834
        %836 = vrot.lane.b32.xlu0 %v790, 8
        %v837 = vpop.permute.xlu0 %836
        %838 = vrot.lane.b32.xlu0 %v793, 8
        %v839 = vpop.permute.xlu0 %838
        %840 = vrot.lane.b32.xlu0 %v796, 8
        %v841 = vpop.permute.xlu0 %840
        %842 = vrot.lane.b32.xlu0 %v799, 8
        %v843 = vpop.permute.xlu0 %842
        %844 = vrot.lane.b32.xlu0 %v802, 8
        %v845 = vpop.permute.xlu0 %844
        %846 = vrot.lane.b32.xlu0 %v805, 8
        %v847 = vpop.permute.xlu0 %846
        %848 = vrot.lane.b32.xlu0 %v808, 8
        %v849 = vpop.permute.xlu0 %848
        %850 = vrot.lane.b32.xlu0 %v811, 8
        %v851 = vpop.permute.xlu0 %850
        %852 = vrot.lane.b32.xlu0 %v814, 8
        %v853 = vpop.permute.xlu0 %852
        %854 = vrot.lane.b32.xlu0 %v817, 8
        %v855 = vpop.permute.xlu0 %854
        %856 = vrot.lane.b32.xlu0 %v820, 8
        %v857 = vpop.permute.xlu0 %856
        %858 = vrot.lane.b32.xlu0 %v823, 8
        %v859 = vpop.permute.xlu0 %858
        %860 = vrot.lane.b32.xlu0 %v826, 8
        %v861 = vpop.permute.xlu0 %860
        %862 = vrot.lane.b32.xlu0 %v829, 8
        %v863 = vpop.permute.xlu0 %862
        %864 = vrot.lane.b32.xlu0 %v832, 8
        %v865 = vpop.permute.xlu0 %864
        %866 = vrot.lane.b32.xlu0 %v835, 8
        %v867 = vpop.permute.xlu0 %866
        %v900 = vunpack.c.l.b16 %v257
        %v901 = vunpack.c.l.b16 %v258
        %v902 = vunpack.c.l.b16 %v259
        %v903 = vunpack.c.l.b16 %v260
        %v904 = vunpack.c.l.b16 %v261
        %v905 = vunpack.c.l.b16 %v262
        %v906 = vunpack.c.l.b16 %v263
        %v907 = vunpack.c.l.b16 %v264
        %v908 = vunpack.c.l.b16 %v265
        %v909 = vunpack.c.l.b16 %v266
        %v910 = vunpack.c.l.b16 %v267
        %v911 = vunpack.c.l.b16 %v268
        %v912 = vunpack.c.l.b16 %v269
        %v913 = vunpack.c.l.b16 %v270
        %v914 = vunpack.c.l.b16 %v271
        %v915 = vunpack.c.l.b16 %v272
        %v916 = vunpack.c.l.b16 %v273
        %v917 = vunpack.c.l.b16 %v274
        %v918 = vunpack.c.l.b16 %v275
        %v919 = vunpack.c.l.b16 %v276
        %v920 = vunpack.c.l.b16 %v277
        %v921 = vunpack.c.l.b16 %v278
        %v922 = vunpack.c.l.b16 %v279
        %v923 = vunpack.c.l.b16 %v280
        %v924 = vunpack.c.l.b16 %v281
        %v925 = vunpack.c.l.b16 %v282
        %v926 = vunpack.c.l.b16 %v283
        %v927 = vunpack.c.l.b16 %v284
        %v928 = vunpack.c.l.b16 %v285
        %v929 = vunpack.c.l.b16 %v286
        %v930 = vunpack.c.l.b16 %v287
        %v931 = vunpack.c.l.b16 %v288
        %v932 = vpack.c.b16 %v901, %v900
        %v933 = vpack.c.b16 %v903, %v902
        %v934 = vpack.c.b16 %v905, %v904
        %v935 = vpack.c.b16 %v907, %v906
        %v936 = vpack.c.b16 %v909, %v908
        %v937 = vpack.c.b16 %v911, %v910
        %v938 = vpack.c.b16 %v913, %v912
        %v939 = vpack.c.b16 %v915, %v914
        %v940 = vpack.c.b16 %v917, %v916
        %v941 = vpack.c.b16 %v919, %v918
        %v942 = vpack.c.b16 %v921, %v920
        %v943 = vpack.c.b16 %v923, %v922
        %v944 = vpack.c.b16 %v925, %v924
        %v945 = vpack.c.b16 %v927, %v926
        %v946 = vpack.c.b16 %v929, %v928
        %v947 = vpack.c.b16 %v931, %v930
        %948 = vrot.lane.b32.xlu0 %v932, 12
        %v949 = vpop.permute.xlu0 %948
        %950 = vrot.lane.b32.xlu0 %v933, 12
        %v951 = vpop.permute.xlu0 %950
        %952 = vrot.lane.b32.xlu0 %v934, 12
        %v953 = vpop.permute.xlu0 %952
        %954 = vrot.lane.b32.xlu0 %v935, 12
        %v955 = vpop.permute.xlu0 %954
        %956 = vrot.lane.b32.xlu0 %v936, 12
        %v957 = vpop.permute.xlu0 %956
        %958 = vrot.lane.b32.xlu0 %v937, 12
        %v959 = vpop.permute.xlu0 %958
        %960 = vrot.lane.b32.xlu0 %v938, 12
        %v961 = vpop.permute.xlu0 %960
        %962 = vrot.lane.b32.xlu0 %v939, 12
        %v963 = vpop.permute.xlu0 %962
        %964 = vrot.lane.b32.xlu0 %v940, 12
        %v965 = vpop.permute.xlu0 %964
        %966 = vrot.lane.b32.xlu0 %v941, 12
        %v967 = vpop.permute.xlu0 %966
        %968 = vrot.lane.b32.xlu0 %v942, 12
        %v969 = vpop.permute.xlu0 %968
        %970 = vrot.lane.b32.xlu0 %v943, 12
        %v971 = vpop.permute.xlu0 %970
        %972 = vrot.lane.b32.xlu0 %v944, 12
        %v973 = vpop.permute.xlu0 %972
        %974 = vrot.lane.b32.xlu0 %v945, 12
        %v975 = vpop.permute.xlu0 %974
        %976 = vrot.lane.b32.xlu0 %v946, 12
        %v977 = vpop.permute.xlu0 %976
        %978 = vrot.lane.b32.xlu0 %v947, 12
        %v979 = vpop.permute.xlu0 %978
        %v996 = vunpack.c.l.b16 %v289
        %v997 = vunpack.c.l.b16 %v290
        %v998 = vunpack.c.l.b16 %v291
        %v999 = vunpack.c.l.b16 %v292
        %v1000 = vunpack.c.l.b16 %v293
        %v1001 = vunpack.c.l.b16 %v294
        %v1002 = vunpack.c.l.b16 %v295
        %v1003 = vunpack.c.l.b16 %v296
        %v1004 = vunpack.c.l.b16 %v297
        %v1005 = vunpack.c.l.b16 %v298
        %v1006 = vunpack.c.l.b16 %v299
        %v1007 = vunpack.c.l.b16 %v300
        %v1008 = vunpack.c.l.b16 %v301
        %v1009 = vunpack.c.l.b16 %v302
        %v1010 = vunpack.c.l.b16 %v303
        %v1011 = vunpack.c.l.b16 %v304
        %v1012 = vpack.c.b16 %v996, %v996
        %v1013 = vpack.c.b16 %v997, %v997
        %v1014 = vpack.c.b16 %v998, %v998
        %v1015 = vpack.c.b16 %v999, %v999
        %v1016 = vpack.c.b16 %v1000, %v1000
        %v1017 = vpack.c.b16 %v1001, %v1001
        %v1018 = vpack.c.b16 %v1002, %v1002
        %v1019 = vpack.c.b16 %v1003, %v1003
        %v1020 = vpack.c.b16 %v1004, %v1004
        %v1021 = vpack.c.b16 %v1005, %v1005
        %v1022 = vpack.c.b16 %v1006, %v1006
        %v1023 = vpack.c.b16 %v1007, %v1007
        %v1024 = vpack.c.b16 %v1008, %v1008
        %v1025 = vpack.c.b16 %v1009, %v1009
        %v1026 = vpack.c.b16 %v1010, %v1010
        %v1027 = vpack.c.b16 %v1011, %v1011
        %v1029 = vshrl.u32 %v932, 16
        %v1031 = vshll.u32 %v932, 16
        %v1033 = vrot.slane %v1031, 1
        %v1034 = vor.u32 %v1029, %v1033
        %v1036 = vshll.u32 %v1012, 16
        %v1038 = vrot.slane %v1036, 1
        %v1039 = vsel %vm514, %v1034, %v1038
        %v1041 = vshrl.u32 %v933, 16
        %v1043 = vshll.u32 %v933, 16
        %v1045 = vrot.slane %v1043, 1
        %v1046 = vor.u32 %v1041, %v1045
        %v1048 = vshll.u32 %v1013, 16
        %v1050 = vrot.slane %v1048, 1
        %v1051 = vsel %vm514, %v1046, %v1050
        %v1053 = vshrl.u32 %v934, 16
        %v1055 = vshll.u32 %v934, 16
        %v1057 = vrot.slane %v1055, 1
        %v1058 = vor.u32 %v1053, %v1057
        %v1060 = vshll.u32 %v1014, 16
        %v1062 = vrot.slane %v1060, 1
        %v1063 = vsel %vm514, %v1058, %v1062
        %v1065 = vshrl.u32 %v935, 16
        %v1067 = vshll.u32 %v935, 16
        %v1069 = vrot.slane %v1067, 1
        %v1070 = vor.u32 %v1065, %v1069
        %v1072 = vshll.u32 %v1015, 16
        %v1074 = vrot.slane %v1072, 1
        %v1075 = vsel %vm514, %v1070, %v1074
        %v1077 = vshrl.u32 %v936, 16
        %v1079 = vshll.u32 %v936, 16
        %v1081 = vrot.slane %v1079, 1
        %v1082 = vor.u32 %v1077, %v1081
        %v1084 = vshll.u32 %v1016, 16
        %v1086 = vrot.slane %v1084, 1
        %v1087 = vsel %vm514, %v1082, %v1086
        %v1089 = vshrl.u32 %v937, 16
        %v1091 = vshll.u32 %v937, 16
        %v1093 = vrot.slane %v1091, 1
        %v1094 = vor.u32 %v1089, %v1093
        %v1096 = vshll.u32 %v1017, 16
        %v1098 = vrot.slane %v1096, 1
        %v1099 = vsel %vm514, %v1094, %v1098
        %v1101 = vshrl.u32 %v938, 16
        %v1103 = vshll.u32 %v938, 16
        %v1105 = vrot.slane %v1103, 1
        %v1106 = vor.u32 %v1101, %v1105
        %v1108 = vshll.u32 %v1018, 16
        %v1110 = vrot.slane %v1108, 1
        %v1111 = vsel %vm514, %v1106, %v1110
        %v1113 = vshrl.u32 %v939, 16
        %v1115 = vshll.u32 %v939, 16
        %v1117 = vrot.slane %v1115, 1
        %v1118 = vor.u32 %v1113, %v1117
        %v1120 = vshll.u32 %v1019, 16
        %v1122 = vrot.slane %v1120, 1
        %v1123 = vsel %vm514, %v1118, %v1122
        %v1125 = vshrl.u32 %v940, 16
        %v1127 = vshll.u32 %v940, 16
        %v1129 = vrot.slane %v1127, 1
        %v1130 = vor.u32 %v1125, %v1129
        %v1132 = vshll.u32 %v1020, 16
        %v1134 = vrot.slane %v1132, 1
        %v1135 = vsel %vm514, %v1130, %v1134
        %v1137 = vshrl.u32 %v941, 16
        %v1139 = vshll.u32 %v941, 16
        %v1141 = vrot.slane %v1139, 1
        %v1142 = vor.u32 %v1137, %v1141
        %v1144 = vshll.u32 %v1021, 16
        %v1146 = vrot.slane %v1144, 1
        %v1147 = vsel %vm514, %v1142, %v1146
        %v1149 = vshrl.u32 %v942, 16
        %v1151 = vshll.u32 %v942, 16
        %v1153 = vrot.slane %v1151, 1
        %v1154 = vor.u32 %v1149, %v1153
        %v1156 = vshll.u32 %v1022, 16
        %v1158 = vrot.slane %v1156, 1
        %v1159 = vsel %vm514, %v1154, %v1158
        %v1161 = vshrl.u32 %v943, 16
        %v1163 = vshll.u32 %v943, 16
        %v1165 = vrot.slane %v1163, 1
        %v1166 = vor.u32 %v1161, %v1165
        %v1168 = vshll.u32 %v1023, 16
        %v1170 = vrot.slane %v1168, 1
        %v1171 = vsel %vm514, %v1166, %v1170
        %v1173 = vshrl.u32 %v944, 16
        %v1175 = vshll.u32 %v944, 16
        %v1177 = vrot.slane %v1175, 1
        %v1178 = vor.u32 %v1173, %v1177
        %v1180 = vshll.u32 %v1024, 16
        %v1182 = vrot.slane %v1180, 1
        %v1183 = vsel %vm514, %v1178, %v1182
        %v1185 = vshrl.u32 %v945, 16
        %v1187 = vshll.u32 %v945, 16
        %v1189 = vrot.slane %v1187, 1
        %v1190 = vor.u32 %v1185, %v1189
        %v1192 = vshll.u32 %v1025, 16
        %v1194 = vrot.slane %v1192, 1
        %v1195 = vsel %vm514, %v1190, %v1194
        %v1197 = vshrl.u32 %v946, 16
        %v1199 = vshll.u32 %v946, 16
        %v1201 = vrot.slane %v1199, 1
        %v1202 = vor.u32 %v1197, %v1201
        %v1204 = vshll.u32 %v1026, 16
        %v1206 = vrot.slane %v1204, 1
        %v1207 = vsel %vm514, %v1202, %v1206
        %v1209 = vshrl.u32 %v947, 16
        %v1211 = vshll.u32 %v947, 16
        %v1213 = vrot.slane %v1211, 1
        %v1214 = vor.u32 %v1209, %v1213
        %v1216 = vshll.u32 %v1027, 16
        %v1218 = vrot.slane %v1216, 1
        %v1219 = vsel %vm514, %v1214, %v1218
        %1220 = vrot.lane.b32.xlu0 %v1039, 16
        %v1221 = vpop.permute.xlu0 %1220
        %1222 = vrot.lane.b32.xlu0 %v1051, 16
        %v1223 = vpop.permute.xlu0 %1222
        %1224 = vrot.lane.b32.xlu0 %v1063, 16
        %v1225 = vpop.permute.xlu0 %1224
        %1226 = vrot.lane.b32.xlu0 %v1075, 16
        %v1227 = vpop.permute.xlu0 %1226
        %1228 = vrot.lane.b32.xlu0 %v1087, 16
        %v1229 = vpop.permute.xlu0 %1228
        %1230 = vrot.lane.b32.xlu0 %v1099, 16
        %v1231 = vpop.permute.xlu0 %1230
        %1232 = vrot.lane.b32.xlu0 %v1111, 16
        %v1233 = vpop.permute.xlu0 %1232
        %1234 = vrot.lane.b32.xlu0 %v1123, 16
        %v1235 = vpop.permute.xlu0 %1234
        %1236 = vrot.lane.b32.xlu0 %v1135, 16
        %v1237 = vpop.permute.xlu0 %1236
        %1238 = vrot.lane.b32.xlu0 %v1147, 16
        %v1239 = vpop.permute.xlu0 %1238
        %1240 = vrot.lane.b32.xlu0 %v1159, 16
        %v1241 = vpop.permute.xlu0 %1240
        %1242 = vrot.lane.b32.xlu0 %v1171, 16
        %v1243 = vpop.permute.xlu0 %1242
        %1244 = vrot.lane.b32.xlu0 %v1183, 16
        %v1245 = vpop.permute.xlu0 %1244
        %1246 = vrot.lane.b32.xlu0 %v1195, 16
        %v1247 = vpop.permute.xlu0 %1246
        %1248 = vrot.lane.b32.xlu0 %v1207, 16
        %v1249 = vpop.permute.xlu0 %1248
        %1250 = vrot.lane.b32.xlu0 %v1219, 16
        %v1251 = vpop.permute.xlu0 %1250
        %v1268 = vunpack.c.l.b16 %v305
        %v1269 = vunpack.c.l.b16 %v306
        %v1270 = vunpack.c.l.b16 %v307
        %v1271 = vunpack.c.l.b16 %v308
        %v1272 = vunpack.c.l.b16 %v309
        %v1273 = vunpack.c.l.b16 %v310
        %v1274 = vunpack.c.l.b16 %v311
        %v1275 = vunpack.c.l.b16 %v312
        %v1276 = vunpack.c.l.b16 %v313
        %v1277 = vunpack.c.l.b16 %v314
        %v1278 = vunpack.c.l.b16 %v315
        %v1279 = vunpack.c.l.b16 %v316
        %v1280 = vunpack.c.l.b16 %v317
        %v1281 = vunpack.c.l.b16 %v318
        %v1282 = vunpack.c.l.b16 %v319
        %v1283 = vunpack.c.l.b16 %v320
        %v1284 = vpack.c.b16 %v901, %v1268
        %v1285 = vpack.c.b16 %v903, %v1269
        %v1286 = vpack.c.b16 %v905, %v1270
        %v1287 = vpack.c.b16 %v907, %v1271
        %v1288 = vpack.c.b16 %v909, %v1272
        %v1289 = vpack.c.b16 %v911, %v1273
        %v1290 = vpack.c.b16 %v913, %v1274
        %v1291 = vpack.c.b16 %v915, %v1275
        %v1292 = vpack.c.b16 %v917, %v1276
        %v1293 = vpack.c.b16 %v919, %v1277
        %v1294 = vpack.c.b16 %v921, %v1278
        %v1295 = vpack.c.b16 %v923, %v1279
        %v1296 = vpack.c.b16 %v925, %v1280
        %v1297 = vpack.c.b16 %v927, %v1281
        %v1298 = vpack.c.b16 %v929, %v1282
        %v1299 = vpack.c.b16 %v931, %v1283
        %v1300 = vrot.slane %v1284, 1
        %v1301 = vrot.slane %v1012, 1
        %v1302 = vsel %vm787, %v1300, %v1301
        %v1303 = vrot.slane %v1285, 1
        %v1304 = vrot.slane %v1013, 1
        %v1305 = vsel %vm787, %v1303, %v1304
        %v1306 = vrot.slane %v1286, 1
        %v1307 = vrot.slane %v1014, 1
        %v1308 = vsel %vm787, %v1306, %v1307
        %v1309 = vrot.slane %v1287, 1
        %v1310 = vrot.slane %v1015, 1
        %v1311 = vsel %vm787, %v1309, %v1310
        %v1312 = vrot.slane %v1288, 1
        %v1313 = vrot.slane %v1016, 1
        %v1314 = vsel %vm787, %v1312, %v1313
        %v1315 = vrot.slane %v1289, 1
        %v1316 = vrot.slane %v1017, 1
        %v1317 = vsel %vm787, %v1315, %v1316
        %v1318 = vrot.slane %v1290, 1
        %v1319 = vrot.slane %v1018, 1
        %v1320 = vsel %vm787, %v1318, %v1319
        %v1321 = vrot.slane %v1291, 1
        %v1322 = vrot.slane %v1019, 1
        %v1323 = vsel %vm787, %v1321, %v1322
        %v1324 = vrot.slane %v1292, 1
        %v1325 = vrot.slane %v1020, 1
        %v1326 = vsel %vm787, %v1324, %v1325
        %v1327 = vrot.slane %v1293, 1
        %v1328 = vrot.slane %v1021, 1
        %v1329 = vsel %vm787, %v1327, %v1328
        %v1330 = vrot.slane %v1294, 1
        %v1331 = vrot.slane %v1022, 1
        %v1332 = vsel %vm787, %v1330, %v1331
        %v1333 = vrot.slane %v1295, 1
        %v1334 = vrot.slane %v1023, 1
        %v1335 = vsel %vm787, %v1333, %v1334
        %v1336 = vrot.slane %v1296, 1
        %v1337 = vrot.slane %v1024, 1
        %v1338 = vsel %vm787, %v1336, %v1337
        %v1339 = vrot.slane %v1297, 1
        %v1340 = vrot.slane %v1025, 1
        %v1341 = vsel %vm787, %v1339, %v1340
        %v1342 = vrot.slane %v1298, 1
        %v1343 = vrot.slane %v1026, 1
        %v1344 = vsel %vm787, %v1342, %v1343
        %v1345 = vrot.slane %v1299, 1
        %v1346 = vrot.slane %v1027, 1
        %v1347 = vsel %vm787, %v1345, %v1346
        %1348 = vrot.lane.b32.xlu0 %v1302, 20
        %v1349 = vpop.permute.xlu0 %1348
        %1350 = vrot.lane.b32.xlu0 %v1305, 20
        %v1351 = vpop.permute.xlu0 %1350
        %1352 = vrot.lane.b32.xlu0 %v1308, 20
        %v1353 = vpop.permute.xlu0 %1352
        %1354 = vrot.lane.b32.xlu0 %v1311, 20
        %v1355 = vpop.permute.xlu0 %1354
        %1356 = vrot.lane.b32.xlu0 %v1314, 20
        %v1357 = vpop.permute.xlu0 %1356
        %1358 = vrot.lane.b32.xlu0 %v1317, 20
        %v1359 = vpop.permute.xlu0 %1358
        %1360 = vrot.lane.b32.xlu0 %v1320, 20
        %v1361 = vpop.permute.xlu0 %1360
        %1362 = vrot.lane.b32.xlu0 %v1323, 20
        %v1363 = vpop.permute.xlu0 %1362
        %1364 = vrot.lane.b32.xlu0 %v1326, 20
        %v1365 = vpop.permute.xlu0 %1364
        %1366 = vrot.lane.b32.xlu0 %v1329, 20
        %v1367 = vpop.permute.xlu0 %1366
        %1368 = vrot.lane.b32.xlu0 %v1332, 20
        %v1369 = vpop.permute.xlu0 %1368
        %1370 = vrot.lane.b32.xlu0 %v1335, 20
        %v1371 = vpop.permute.xlu0 %1370
        %1372 = vrot.lane.b32.xlu0 %v1338, 20
        %v1373 = vpop.permute.xlu0 %1372
        %1374 = vrot.lane.b32.xlu0 %v1341, 20
        %v1375 = vpop.permute.xlu0 %1374
        %1376 = vrot.lane.b32.xlu0 %v1344, 20
        %v1377 = vpop.permute.xlu0 %1376
        %1378 = vrot.lane.b32.xlu0 %v1347, 20
        %v1379 = vpop.permute.xlu0 %1378
        %v1412 = vunpack.c.l.b16 %v322
        %v1413 = vunpack.c.l.b16 %v323
        %v1414 = vunpack.c.l.b16 %v324
        %v1415 = vunpack.c.l.b16 %v325
        %v1416 = vunpack.c.l.b16 %v326
        %v1417 = vunpack.c.l.b16 %v327
        %v1418 = vunpack.c.l.b16 %v328
        %v1419 = vunpack.c.l.b16 %v329
        %v1420 = vunpack.c.l.b16 %v330
        %v1421 = vunpack.c.l.b16 %v331
        %v1422 = vunpack.c.l.b16 %v332
        %v1423 = vunpack.c.l.b16 %v333
        %v1424 = vunpack.c.l.b16 %v334
        %v1425 = vunpack.c.l.b16 %v335
        %v1426 = vunpack.c.l.b16 %v336
        %v1427 = vunpack.c.l.b16 %v337
        %v1428 = vunpack.c.l.b16 %v338
        %v1429 = vunpack.c.l.b16 %v339
        %v1430 = vunpack.c.l.b16 %v340
        %v1431 = vunpack.c.l.b16 %v341
        %v1432 = vunpack.c.l.b16 %v342
        %v1433 = vunpack.c.l.b16 %v343
        %v1434 = vunpack.c.l.b16 %v344
        %v1435 = vunpack.c.l.b16 %v345
        %v1436 = vunpack.c.l.b16 %v346
        %v1437 = vunpack.c.l.b16 %v347
        %v1438 = vunpack.c.l.b16 %v348
        %v1439 = vunpack.c.l.b16 %v349
        %v1440 = vunpack.c.l.b16 %v350
        %v1441 = vunpack.c.l.b16 %v351
        %v1442 = vunpack.c.l.b16 %v352
        %v1443 = vunpack.c.l.b16 %v353
        %v1444 = vpack.c.b16 %v1413, %v1412
        %v1445 = vpack.c.b16 %v1415, %v1414
        %v1446 = vpack.c.b16 %v1417, %v1416
        %v1447 = vpack.c.b16 %v1419, %v1418
        %v1448 = vpack.c.b16 %v1421, %v1420
        %v1449 = vpack.c.b16 %v1423, %v1422
        %v1450 = vpack.c.b16 %v1425, %v1424
        %v1451 = vpack.c.b16 %v1427, %v1426
        %v1452 = vpack.c.b16 %v1429, %v1428
        %v1453 = vpack.c.b16 %v1431, %v1430
        %v1454 = vpack.c.b16 %v1433, %v1432
        %v1455 = vpack.c.b16 %v1435, %v1434
        %v1456 = vpack.c.b16 %v1437, %v1436
        %v1457 = vpack.c.b16 %v1439, %v1438
        %v1458 = vpack.c.b16 %v1441, %v1440
        %v1459 = vpack.c.b16 %v1443, %v1442
        %1460 = vrot.lane.b32.xlu0 %v1444, 24
        %v1461 = vpop.permute.xlu0 %1460
        %1462 = vrot.lane.b32.xlu0 %v1445, 24
        %v1463 = vpop.permute.xlu0 %1462
        %1464 = vrot.lane.b32.xlu0 %v1446, 24
        %v1465 = vpop.permute.xlu0 %1464
        %1466 = vrot.lane.b32.xlu0 %v1447, 24
        %v1467 = vpop.permute.xlu0 %1466
        %1468 = vrot.lane.b32.xlu0 %v1448, 24
        %v1469 = vpop.permute.xlu0 %1468
        %1470 = vrot.lane.b32.xlu0 %v1449, 24
        %v1471 = vpop.permute.xlu0 %1470
        %1472 = vrot.lane.b32.xlu0 %v1450, 24
        %v1473 = vpop.permute.xlu0 %1472
        %1474 = vrot.lane.b32.xlu0 %v1451, 24
        %v1475 = vpop.permute.xlu0 %1474
        %1476 = vrot.lane.b32.xlu0 %v1452, 24
        %v1477 = vpop.permute.xlu0 %1476
        %1478 = vrot.lane.b32.xlu0 %v1453, 24
        %v1479 = vpop.permute.xlu0 %1478
        %1480 = vrot.lane.b32.xlu0 %v1454, 24
        %v1481 = vpop.permute.xlu0 %1480
        %1482 = vrot.lane.b32.xlu0 %v1455, 24
        %v1483 = vpop.permute.xlu0 %1482
        %1484 = vrot.lane.b32.xlu0 %v1456, 24
        %v1485 = vpop.permute.xlu0 %1484
        %1486 = vrot.lane.b32.xlu0 %v1457, 24
        %v1487 = vpop.permute.xlu0 %1486
        %1488 = vrot.lane.b32.xlu0 %v1458, 24
        %v1489 = vpop.permute.xlu0 %1488
        %1490 = vrot.lane.b32.xlu0 %v1459, 24
        %v1491 = vpop.permute.xlu0 %1490
        %v1508 = vunpack.c.l.b16 %v354
        %v1509 = vunpack.c.l.b16 %v355
        %v1510 = vunpack.c.l.b16 %v356
        %v1511 = vunpack.c.l.b16 %v357
        %v1512 = vunpack.c.l.b16 %v358
        %v1513 = vunpack.c.l.b16 %v359
        %v1514 = vunpack.c.l.b16 %v360
        %v1515 = vunpack.c.l.b16 %v361
        %v1516 = vunpack.c.l.b16 %v362
        %v1517 = vunpack.c.l.b16 %v363
        %v1518 = vunpack.c.l.b16 %v364
        %v1519 = vunpack.c.l.b16 %v365
        %v1520 = vunpack.c.l.b16 %v366
        %v1521 = vunpack.c.l.b16 %v367
        %v1522 = vunpack.c.l.b16 %v368
        %v1523 = vunpack.c.l.b16 %v369
        %v1524 = vpack.c.b16 %v1508, %v1508
        %v1525 = vpack.c.b16 %v1509, %v1509
        %v1526 = vpack.c.b16 %v1510, %v1510
        %v1527 = vpack.c.b16 %v1511, %v1511
        %v1528 = vpack.c.b16 %v1512, %v1512
        %v1529 = vpack.c.b16 %v1513, %v1513
        %v1530 = vpack.c.b16 %v1514, %v1514
        %v1531 = vpack.c.b16 %v1515, %v1515
        %v1532 = vpack.c.b16 %v1516, %v1516
        %v1533 = vpack.c.b16 %v1517, %v1517
        %v1534 = vpack.c.b16 %v1518, %v1518
        %v1535 = vpack.c.b16 %v1519, %v1519
        %v1536 = vpack.c.b16 %v1520, %v1520
        %v1537 = vpack.c.b16 %v1521, %v1521
        %v1538 = vpack.c.b16 %v1522, %v1522
        %v1539 = vpack.c.b16 %v1523, %v1523
        %v1541 = vshrl.u32 %v1444, 16
        %v1543 = vshll.u32 %v1444, 16
        %v1545 = vrot.slane %v1543, 1
        %v1546 = vor.u32 %v1541, %v1545
        %v1548 = vshll.u32 %v1524, 16
        %v1550 = vrot.slane %v1548, 1
        %v1551 = vsel %vm514, %v1546, %v1550
        %v1553 = vshrl.u32 %v1445, 16
        %v1555 = vshll.u32 %v1445, 16
        %v1557 = vrot.slane %v1555, 1
        %v1558 = vor.u32 %v1553, %v1557
        %v1560 = vshll.u32 %v1525, 16
        %v1562 = vrot.slane %v1560, 1
        %v1563 = vsel %vm514, %v1558, %v1562
        %v1565 = vshrl.u32 %v1446, 16
        %v1567 = vshll.u32 %v1446, 16
        %v1569 = vrot.slane %v1567, 1
        %v1570 = vor.u32 %v1565, %v1569
        %v1572 = vshll.u32 %v1526, 16
        %v1574 = vrot.slane %v1572, 1
        %v1575 = vsel %vm514, %v1570, %v1574
        %v1577 = vshrl.u32 %v1447, 16
        %v1579 = vshll.u32 %v1447, 16
        %v1581 = vrot.slane %v1579, 1
        %v1582 = vor.u32 %v1577, %v1581
        %v1584 = vshll.u32 %v1527, 16
        %v1586 = vrot.slane %v1584, 1
        %v1587 = vsel %vm514, %v1582, %v1586
        %v1589 = vshrl.u32 %v1448, 16
        %v1591 = vshll.u32 %v1448, 16
        %v1593 = vrot.slane %v1591, 1
        %v1594 = vor.u32 %v1589, %v1593
        %v1596 = vshll.u32 %v1528, 16
        %v1598 = vrot.slane %v1596, 1
        %v1599 = vsel %vm514, %v1594, %v1598
        %v1601 = vshrl.u32 %v1449, 16
        %v1603 = vshll.u32 %v1449, 16
        %v1605 = vrot.slane %v1603, 1
        %v1606 = vor.u32 %v1601, %v1605
        %v1608 = vshll.u32 %v1529, 16
        %v1610 = vrot.slane %v1608, 1
        %v1611 = vsel %vm514, %v1606, %v1610
        %v1613 = vshrl.u32 %v1450, 16
        %v1615 = vshll.u32 %v1450, 16
        %v1617 = vrot.slane %v1615, 1
        %v1618 = vor.u32 %v1613, %v1617
        %v1620 = vshll.u32 %v1530, 16
        %v1622 = vrot.slane %v1620, 1
        %v1623 = vsel %vm514, %v1618, %v1622
        %v1625 = vshrl.u32 %v1451, 16
        %v1627 = vshll.u32 %v1451, 16
        %v1629 = vrot.slane %v1627, 1
        %v1630 = vor.u32 %v1625, %v1629
        %v1632 = vshll.u32 %v1531, 16
        %v1634 = vrot.slane %v1632, 1
        %v1635 = vsel %vm514, %v1630, %v1634
        %v1637 = vshrl.u32 %v1452, 16
        %v1639 = vshll.u32 %v1452, 16
        %v1641 = vrot.slane %v1639, 1
        %v1642 = vor.u32 %v1637, %v1641
        %v1644 = vshll.u32 %v1532, 16
        %v1646 = vrot.slane %v1644, 1
        %v1647 = vsel %vm514, %v1642, %v1646
        %v1649 = vshrl.u32 %v1453, 16
        %v1651 = vshll.u32 %v1453, 16
        %v1653 = vrot.slane %v1651, 1
        %v1654 = vor.u32 %v1649, %v1653
        %v1656 = vshll.u32 %v1533, 16
        %v1658 = vrot.slane %v1656, 1
        %v1659 = vsel %vm514, %v1654, %v1658
        %v1661 = vshrl.u32 %v1454, 16
        %v1663 = vshll.u32 %v1454, 16
        %v1665 = vrot.slane %v1663, 1
        %v1666 = vor.u32 %v1661, %v1665
        %v1668 = vshll.u32 %v1534, 16
        %v1670 = vrot.slane %v1668, 1
        %v1671 = vsel %vm514, %v1666, %v1670
        %v1673 = vshrl.u32 %v1455, 16
        %v1675 = vshll.u32 %v1455, 16
        %v1677 = vrot.slane %v1675, 1
        %v1678 = vor.u32 %v1673, %v1677
        %v1680 = vshll.u32 %v1535, 16
        %v1682 = vrot.slane %v1680, 1
        %v1683 = vsel %vm514, %v1678, %v1682
        %v1685 = vshrl.u32 %v1456, 16
        %v1687 = vshll.u32 %v1456, 16
        %v1689 = vrot.slane %v1687, 1
        %v1690 = vor.u32 %v1685, %v1689
        %v1692 = vshll.u32 %v1536, 16
        %v1694 = vrot.slane %v1692, 1
        %v1695 = vsel %vm514, %v1690, %v1694
        %v1697 = vshrl.u32 %v1457, 16
        %v1699 = vshll.u32 %v1457, 16
        %v1701 = vrot.slane %v1699, 1
        %v1702 = vor.u32 %v1697, %v1701
        %v1704 = vshll.u32 %v1537, 16
        %v1706 = vrot.slane %v1704, 1
        %v1707 = vsel %vm514, %v1702, %v1706
        %v1709 = vshrl.u32 %v1458, 16
        %v1711 = vshll.u32 %v1458, 16
        %v1713 = vrot.slane %v1711, 1
        %v1714 = vor.u32 %v1709, %v1713
        %v1716 = vshll.u32 %v1538, 16
        %v1718 = vrot.slane %v1716, 1
        %v1719 = vsel %vm514, %v1714, %v1718
        %v1721 = vshrl.u32 %v1459, 16
        %v1723 = vshll.u32 %v1459, 16
        %v1725 = vrot.slane %v1723, 1
        %v1726 = vor.u32 %v1721, %v1725
        %v1728 = vshll.u32 %v1539, 16
        %v1730 = vrot.slane %v1728, 1
        %v1731 = vsel %vm514, %v1726, %v1730
        %1732 = vrot.lane.b32.xlu0 %v1551, 28
        %v1733 = vpop.permute.xlu0 %1732
        %1734 = vrot.lane.b32.xlu0 %v1563, 28
        %v1735 = vpop.permute.xlu0 %1734
        %1736 = vrot.lane.b32.xlu0 %v1575, 28
        %v1737 = vpop.permute.xlu0 %1736
        %1738 = vrot.lane.b32.xlu0 %v1587, 28
        %v1739 = vpop.permute.xlu0 %1738
        %1740 = vrot.lane.b32.xlu0 %v1599, 28
        %v1741 = vpop.permute.xlu0 %1740
        %1742 = vrot.lane.b32.xlu0 %v1611, 28
        %v1743 = vpop.permute.xlu0 %1742
        %1744 = vrot.lane.b32.xlu0 %v1623, 28
        %v1745 = vpop.permute.xlu0 %1744
        %1746 = vrot.lane.b32.xlu0 %v1635, 28
        %v1747 = vpop.permute.xlu0 %1746
        %1748 = vrot.lane.b32.xlu0 %v1647, 28
        %v1749 = vpop.permute.xlu0 %1748
        %1750 = vrot.lane.b32.xlu0 %v1659, 28
        %v1751 = vpop.permute.xlu0 %1750
        %1752 = vrot.lane.b32.xlu0 %v1671, 28
        %v1753 = vpop.permute.xlu0 %1752
        %1754 = vrot.lane.b32.xlu0 %v1683, 28
        %v1755 = vpop.permute.xlu0 %1754
        %1756 = vrot.lane.b32.xlu0 %v1695, 28
        %v1757 = vpop.permute.xlu0 %1756
        %1758 = vrot.lane.b32.xlu0 %v1707, 28
        %v1759 = vpop.permute.xlu0 %1758
        %1760 = vrot.lane.b32.xlu0 %v1719, 28
        %v1761 = vpop.permute.xlu0 %1760
        %1762 = vrot.lane.b32.xlu0 %v1731, 28
        %v1763 = vpop.permute.xlu0 %1762
        %v1780 = vunpack.c.l.b16 %v370
        %v1781 = vunpack.c.l.b16 %v371
        %v1782 = vunpack.c.l.b16 %v372
        %v1783 = vunpack.c.l.b16 %v373
        %v1784 = vunpack.c.l.b16 %v374
        %v1785 = vunpack.c.l.b16 %v375
        %v1786 = vunpack.c.l.b16 %v376
        %v1787 = vunpack.c.l.b16 %v377
        %v1788 = vunpack.c.l.b16 %v378
        %v1789 = vunpack.c.l.b16 %v379
        %v1790 = vunpack.c.l.b16 %v380
        %v1791 = vunpack.c.l.b16 %v381
        %v1792 = vunpack.c.l.b16 %v382
        %v1793 = vunpack.c.l.b16 %v383
        %v1794 = vunpack.c.l.b16 %v384
        %v1795 = vunpack.c.l.b16 %v385
        %v1796 = vpack.c.b16 %v1413, %v1780
        %v1797 = vpack.c.b16 %v1415, %v1781
        %v1798 = vpack.c.b16 %v1417, %v1782
        %v1799 = vpack.c.b16 %v1419, %v1783
        %v1800 = vpack.c.b16 %v1421, %v1784
        %v1801 = vpack.c.b16 %v1423, %v1785
        %v1802 = vpack.c.b16 %v1425, %v1786
        %v1803 = vpack.c.b16 %v1427, %v1787
        %v1804 = vpack.c.b16 %v1429, %v1788
        %v1805 = vpack.c.b16 %v1431, %v1789
        %v1806 = vpack.c.b16 %v1433, %v1790
        %v1807 = vpack.c.b16 %v1435, %v1791
        %v1808 = vpack.c.b16 %v1437, %v1792
        %v1809 = vpack.c.b16 %v1439, %v1793
        %v1810 = vpack.c.b16 %v1441, %v1794
        %v1811 = vpack.c.b16 %v1443, %v1795
        %v1812 = vrot.slane %v1796, 1
        %v1813 = vrot.slane %v1524, 1
        %v1814 = vsel %vm787, %v1812, %v1813
        %v1815 = vrot.slane %v1797, 1
        %v1816 = vrot.slane %v1525, 1
        %v1817 = vsel %vm787, %v1815, %v1816
        %v1818 = vrot.slane %v1798, 1
        %v1819 = vrot.slane %v1526, 1
        %v1820 = vsel %vm787, %v1818, %v1819
        %v1821 = vrot.slane %v1799, 1
        %v1822 = vrot.slane %v1527, 1
        %v1823 = vsel %vm787, %v1821, %v1822
        %v1824 = vrot.slane %v1800, 1
        %v1825 = vrot.slane %v1528, 1
        %v1826 = vsel %vm787, %v1824, %v1825
        %v1827 = vrot.slane %v1801, 1
        %v1828 = vrot.slane %v1529, 1
        %v1829 = vsel %vm787, %v1827, %v1828
        %v1830 = vrot.slane %v1802, 1
        %v1831 = vrot.slane %v1530, 1
        %v1832 = vsel %vm787, %v1830, %v1831
        %v1833 = vrot.slane %v1803, 1
        %v1834 = vrot.slane %v1531, 1
        %v1835 = vsel %vm787, %v1833, %v1834
        %v1836 = vrot.slane %v1804, 1
        %v1837 = vrot.slane %v1532, 1
        %v1838 = vsel %vm787, %v1836, %v1837
        %v1839 = vrot.slane %v1805, 1
        %v1840 = vrot.slane %v1533, 1
        %v1841 = vsel %vm787, %v1839, %v1840
        %v1842 = vrot.slane %v1806, 1
        %v1843 = vrot.slane %v1534, 1
        %v1844 = vsel %vm787, %v1842, %v1843
        %v1845 = vrot.slane %v1807, 1
        %v1846 = vrot.slane %v1535, 1
        %v1847 = vsel %vm787, %v1845, %v1846
        %v1848 = vrot.slane %v1808, 1
        %v1849 = vrot.slane %v1536, 1
        %v1850 = vsel %vm787, %v1848, %v1849
        %v1851 = vrot.slane %v1809, 1
        %v1852 = vrot.slane %v1537, 1
        %v1853 = vsel %vm787, %v1851, %v1852
        %v1854 = vrot.slane %v1810, 1
        %v1855 = vrot.slane %v1538, 1
        %v1856 = vsel %vm787, %v1854, %v1855
        %v1857 = vrot.slane %v1811, 1
        %v1858 = vrot.slane %v1539, 1
        %v1859 = vsel %vm787, %v1857, %v1858
        %1860 = vrot.lane.b32.xlu0 %v1814, 32
        %v1861 = vpop.permute.xlu0 %1860
        %1862 = vrot.lane.b32.xlu0 %v1817, 32
        %v1863 = vpop.permute.xlu0 %1862
        %1864 = vrot.lane.b32.xlu0 %v1820, 32
        %v1865 = vpop.permute.xlu0 %1864
        %1866 = vrot.lane.b32.xlu0 %v1823, 32
        %v1867 = vpop.permute.xlu0 %1866
        %1868 = vrot.lane.b32.xlu0 %v1826, 32
        %v1869 = vpop.permute.xlu0 %1868
        %1870 = vrot.lane.b32.xlu0 %v1829, 32
        %v1871 = vpop.permute.xlu0 %1870
        %1872 = vrot.lane.b32.xlu0 %v1832, 32
        %v1873 = vpop.permute.xlu0 %1872
        %1874 = vrot.lane.b32.xlu0 %v1835, 32
        %v1875 = vpop.permute.xlu0 %1874
        %1876 = vrot.lane.b32.xlu0 %v1838, 32
        %v1877 = vpop.permute.xlu0 %1876
        %1878 = vrot.lane.b32.xlu0 %v1841, 32
        %v1879 = vpop.permute.xlu0 %1878
        %1880 = vrot.lane.b32.xlu0 %v1844, 32
        %v1881 = vpop.permute.xlu0 %1880
        %1882 = vrot.lane.b32.xlu0 %v1847, 32
        %v1883 = vpop.permute.xlu0 %1882
        %1884 = vrot.lane.b32.xlu0 %v1850, 32
        %v1885 = vpop.permute.xlu0 %1884
        %1886 = vrot.lane.b32.xlu0 %v1853, 32
        %v1887 = vpop.permute.xlu0 %1886
        %1888 = vrot.lane.b32.xlu0 %v1856, 32
        %v1889 = vpop.permute.xlu0 %1888
        %1890 = vrot.lane.b32.xlu0 %v1859, 32
        %v1891 = vpop.permute.xlu0 %1890
        %vm1892 = vcmask 31744
        %v1894 = vsel %vm1892, %v450, %v708
        %v1896 = vsel %vm1892, %v451, %v710
        %v1898 = vsel %vm1892, %v452, %v712
        %v1900 = vsel %vm1892, %v453, %v714
        %v1902 = vsel %vm1892, %v454, %v716
        %v1904 = vsel %vm1892, %v455, %v718
        %v1906 = vsel %vm1892, %v456, %v720
        %v1908 = vsel %vm1892, %v457, %v722
        %v1910 = vsel %vm1892, %v458, %v724
        %v1912 = vsel %vm1892, %v459, %v726
        %v1914 = vsel %vm1892, %v460, %v728
        %v1916 = vsel %vm1892, %v461, %v730
        %v1918 = vsel %vm1892, %v462, %v732
        %v1920 = vsel %vm1892, %v463, %v734
        %v1922 = vsel %vm1892, %v464, %v736
        %v1924 = vsel %vm1892, %v465, %v738
        %vm1925 = vcmask 64512
        %v1927 = vsel %vm1925, %v1894, %v837
        %v1929 = vsel %vm1925, %v1896, %v839
        %v1931 = vsel %vm1925, %v1898, %v841
        %v1933 = vsel %vm1925, %v1900, %v843
        %v1935 = vsel %vm1925, %v1902, %v845
        %v1937 = vsel %vm1925, %v1904, %v847
        %v1939 = vsel %vm1925, %v1906, %v849
        %v1941 = vsel %vm1925, %v1908, %v851
        %v1943 = vsel %vm1925, %v1910, %v853
        %v1945 = vsel %vm1925, %v1912, %v855
        %v1947 = vsel %vm1925, %v1914, %v857
        %v1949 = vsel %vm1925, %v1916, %v859
        %v1951 = vsel %vm1925, %v1918, %v861
        %v1953 = vsel %vm1925, %v1920, %v863
        %v1955 = vsel %vm1925, %v1922, %v865
        %v1957 = vsel %vm1925, %v1924, %v867
        %vm1958 = vcmask 97280
        %v1960 = vsel %vm1958, %v1927, %v949
        %v1962 = vsel %vm1958, %v1929, %v951
        %v1964 = vsel %vm1958, %v1931, %v953
        %v1966 = vsel %vm1958, %v1933, %v955
        %v1968 = vsel %vm1958, %v1935, %v957
        %v1970 = vsel %vm1958, %v1937, %v959
        %v1972 = vsel %vm1958, %v1939, %v961
        %v1974 = vsel %vm1958, %v1941, %v963
        %v1976 = vsel %vm1958, %v1943, %v965
        %v1978 = vsel %vm1958, %v1945, %v967
        %v1980 = vsel %vm1958, %v1947, %v969
        %v1982 = vsel %vm1958, %v1949, %v971
        %v1984 = vsel %vm1958, %v1951, %v973
        %v1986 = vsel %vm1958, %v1953, %v975
        %v1988 = vsel %vm1958, %v1955, %v977
        %v1990 = vsel %vm1958, %v1957, %v979
        %vm1991 = vcmask 130048
        %v1993 = vsel %vm1991, %v1960, %v1221
        %v1995 = vsel %vm1991, %v1962, %v1223
        %v1997 = vsel %vm1991, %v1964, %v1225
        %v1999 = vsel %vm1991, %v1966, %v1227
        %v2001 = vsel %vm1991, %v1968, %v1229
        %v2003 = vsel %vm1991, %v1970, %v1231
        %v2005 = vsel %vm1991, %v1972, %v1233
        %v2007 = vsel %vm1991, %v1974, %v1235
        %v2009 = vsel %vm1991, %v1976, %v1237
        %v2011 = vsel %vm1991, %v1978, %v1239
        %v2013 = vsel %vm1991, %v1980, %v1241
        %v2015 = vsel %vm1991, %v1982, %v1243
        %v2017 = vsel %vm1991, %v1984, %v1245
        %v2019 = vsel %vm1991, %v1986, %v1247
        %v2021 = vsel %vm1991, %v1988, %v1249
        %v2023 = vsel %vm1991, %v1990, %v1251
        %vm2024 = vcmask 162816
        %v2026 = vsel %vm2024, %v1993, %v1349
        %v2028 = vsel %vm2024, %v1995, %v1351
        %v2030 = vsel %vm2024, %v1997, %v1353
        %v2032 = vsel %vm2024, %v1999, %v1355
        %v2034 = vsel %vm2024, %v2001, %v1357
        %v2036 = vsel %vm2024, %v2003, %v1359
        %v2038 = vsel %vm2024, %v2005, %v1361
        %v2040 = vsel %vm2024, %v2007, %v1363
        %v2042 = vsel %vm2024, %v2009, %v1365
        %v2044 = vsel %vm2024, %v2011, %v1367
        %v2046 = vsel %vm2024, %v2013, %v1369
        %v2048 = vsel %vm2024, %v2015, %v1371
        %v2050 = vsel %vm2024, %v2017, %v1373
        %v2052 = vsel %vm2024, %v2019, %v1375
        %v2054 = vsel %vm2024, %v2021, %v1377
        %v2056 = vsel %vm2024, %v2023, %v1379
        %vm2057 = vcmask 195584
        %v2059 = vsel %vm2057, %v2026, %v1461
        %v2061 = vsel %vm2057, %v2028, %v1463
        %v2063 = vsel %vm2057, %v2030, %v1465
        %v2065 = vsel %vm2057, %v2032, %v1467
        %v2067 = vsel %vm2057, %v2034, %v1469
        %v2069 = vsel %vm2057, %v2036, %v1471
        %v2071 = vsel %vm2057, %v2038, %v1473
        %v2073 = vsel %vm2057, %v2040, %v1475
        %v2075 = vsel %vm2057, %v2042, %v1477
        %v2077 = vsel %vm2057, %v2044, %v1479
        %v2079 = vsel %vm2057, %v2046, %v1481
        %v2081 = vsel %vm2057, %v2048, %v1483
        %v2083 = vsel %vm2057, %v2050, %v1485
        %v2085 = vsel %vm2057, %v2052, %v1487
        %v2087 = vsel %vm2057, %v2054, %v1489
        %v2089 = vsel %vm2057, %v2056, %v1491
        %vm2090 = vcmask 228352
        %v2092 = vsel %vm2090, %v2059, %v1733
        %v2094 = vsel %vm2090, %v2061, %v1735
        %v2096 = vsel %vm2090, %v2063, %v1737
        %v2098 = vsel %vm2090, %v2065, %v1739
        %v2100 = vsel %vm2090, %v2067, %v1741
        %v2102 = vsel %vm2090, %v2069, %v1743
        %v2104 = vsel %vm2090, %v2071, %v1745
        %v2106 = vsel %vm2090, %v2073, %v1747
        %v2108 = vsel %vm2090, %v2075, %v1749
        %v2110 = vsel %vm2090, %v2077, %v1751
        %v2112 = vsel %vm2090, %v2079, %v1753
        %v2114 = vsel %vm2090, %v2081, %v1755
        %v2116 = vsel %vm2090, %v2083, %v1757
        %v2118 = vsel %vm2090, %v2085, %v1759
        %v2120 = vsel %vm2090, %v2087, %v1761
        %v2122 = vsel %vm2090, %v2089, %v1763
        %vm2123 = vcmask 261120
        %v2125 = vsel %vm2123, %v2092, %v1861
        %v2127 = vsel %vm2123, %v2094, %v1863
        %v2129 = vsel %vm2123, %v2096, %v1865
        %v2131 = vsel %vm2123, %v2098, %v1867
        %v2133 = vsel %vm2123, %v2100, %v1869
        %v2135 = vsel %vm2123, %v2102, %v1871
        %v2137 = vsel %vm2123, %v2104, %v1873
        %v2139 = vsel %vm2123, %v2106, %v1875
        %v2141 = vsel %vm2123, %v2108, %v1877
        %v2143 = vsel %vm2123, %v2110, %v1879
        %v2145 = vsel %vm2123, %v2112, %v1881
        %v2147 = vsel %vm2123, %v2114, %v1883
        %v2149 = vsel %vm2123, %v2116, %v1885
        %v2151 = vsel %vm2123, %v2118, %v1887
        %v2153 = vsel %vm2123, %v2120, %v1889
        %v2155 = vsel %vm2123, %v2122, %v1891
        %v2156 = vld [vmem:[%s1] sm:$0xf]
        %v2157 = vld [vmem:[%s1 + $0x4] sm:$0xf]
        %v2158 = vld [vmem:[%s1 + $0x8] sm:$0xf]
        %v2159 = vld [vmem:[%s1 + $0xc] sm:$0xf]
        %v2160 = vld [vmem:[%s1 + $0x10] sm:$0x3]
        %v2161 = vld [vmem:[%s2] sm:$0x1]
        %v2163 = vperm.slane %v2161, 0
        %v2170 = vunpack.c.l.b16 %v2156
        %v2171 = vunpack.c.l.b16 %v2157
        %v2172 = vunpack.c.l.b16 %v2158
        %v2173 = vunpack.c.l.b16 %v2159
        %v2174 = vunpack.c.l.b16 %v2160
        %v2175 = vpack.c.b16 %v2171, %v2170
        %v2176 = vpack.c.b16 %v2173, %v2172
        %v2177 = vpack.c.b16 %v2174, %v2174
        %vm2180 = vcmask 293888
        %v2181 = vsel %vm2180, %v2125, 0
        %v2183 = vsel %vm2180, %v2127, 0
        %v2185 = vsel %vm2180, %v2129, 0
        %v2187 = vsel %vm2180, %v2131, 0
        %v2189 = vsel %vm2180, %v2133, 0
        %v2191 = vsel %vm2180, %v2135, 0
        %v2193 = vsel %vm2180, %v2137, 0
        %v2195 = vsel %vm2180, %v2139, 0
        %v2197 = vsel %vm2180, %v2141, 0
        %v2199 = vsel %vm2180, %v2143, 0
        %v2201 = vsel %vm2180, %v2145, 0
        %v2203 = vsel %vm2180, %v2147, 0
        %v2205 = vsel %vm2180, %v2149, 0
        %v2207 = vsel %vm2180, %v2151, 0
        %v2209 = vsel %vm2180, %v2153, 0
        %v2211 = vsel %vm2180, %v2155, 0
        %vm2213 = vcmask 1041408
        %v2215 = vsel %vm2213, %v2177, 0
        %2217 = vmatpush.bf16.msra.mxu0 0
        %2218 = vmatpush.bf16.msra.mxu0 0
        %2219 = vmatpush.bf16.msra.mxu0 0
        %2220 = vmatpush.bf16.msra.mxu0 0
        %2221 = vmatpush.bf16.msra.mxu0 0
        %2222 = vmatpush.bf16.msra.mxu0 %v2215
        %2223 = vmatpush.bf16.msra.mxu0 %v2176
        %2224 = vmatpush.bf16.msra.mxu0 %v2175
        %2225 = vmatmul.bf16.gmra.mxu0 %v2181
        %v2226 = vpop.f32.mrf.mxu0
        %v2227 = vadd.f32 %v2163, %v2226
        %v2228 = vpop.f32.mrf.mxu0
        %v2229 = vadd.f32 %v2163, %v2228
        %2230 = vmatmul.bf16.gmra.mxu0 %v2183
        %v2231 = vpop.f32.mrf.mxu0
        %v2232 = vadd.f32 %v2163, %v2231
        %v2233 = vpop.f32.mrf.mxu0
        %v2234 = vadd.f32 %v2163, %v2233
        %2235 = vmatmul.bf16.gmra.mxu0 %v2185
        %v2236 = vpop.f32.mrf.mxu0
        %v2237 = vadd.f32 %v2163, %v2236
        %v2238 = vpop.f32.mrf.mxu0
        %v2239 = vadd.f32 %v2163, %v2238
        %2240 = vmatmul.bf16.gmra.mxu0 %v2187
        %v2241 = vpop.f32.mrf.mxu0
        %v2242 = vadd.f32 %v2163, %v2241
        %v2243 = vpop.f32.mrf.mxu0
        %v2244 = vadd.f32 %v2163, %v2243
        %2245 = vmatmul.bf16.gmra.mxu0 %v2189
        %v2246 = vpop.f32.mrf.mxu0
        %v2247 = vadd.f32 %v2163, %v2246
        %v2248 = vpop.f32.mrf.mxu0
        %v2249 = vadd.f32 %v2163, %v2248
        %2250 = vmatmul.bf16.gmra.mxu0 %v2191
        %v2251 = vpop.f32.mrf.mxu0
        %v2252 = vadd.f32 %v2163, %v2251
        %v2253 = vpop.f32.mrf.mxu0
        %v2254 = vadd.f32 %v2163, %v2253
        %2255 = vmatmul.bf16.gmra.mxu0 %v2193
        %v2256 = vpop.f32.mrf.mxu0
        %v2257 = vadd.f32 %v2163, %v2256
        %v2258 = vpop.f32.mrf.mxu0
        %v2259 = vadd.f32 %v2163, %v2258
        %2260 = vmatmul.bf16.gmra.mxu0 %v2195
        %v2261 = vpop.f32.mrf.mxu0
        %v2262 = vadd.f32 %v2163, %v2261
        %v2263 = vpop.f32.mrf.mxu0
        %v2264 = vadd.f32 %v2163, %v2263
        %2265 = vmatmul.bf16.gmra.mxu0 %v2197
        %v2266 = vpop.f32.mrf.mxu0
        %v2267 = vadd.f32 %v2163, %v2266
        %v2268 = vpop.f32.mrf.mxu0
        %v2269 = vadd.f32 %v2163, %v2268
        %2270 = vmatmul.bf16.gmra.mxu0 %v2199
        %v2271 = vpop.f32.mrf.mxu0
        %v2272 = vadd.f32 %v2163, %v2271
        %v2273 = vpop.f32.mrf.mxu0
        %v2274 = vadd.f32 %v2163, %v2273
        %2275 = vmatmul.bf16.gmra.mxu0 %v2201
        %v2276 = vpop.f32.mrf.mxu0
        %v2277 = vadd.f32 %v2163, %v2276
        %v2278 = vpop.f32.mrf.mxu0
        %v2279 = vadd.f32 %v2163, %v2278
        %2280 = vmatmul.bf16.gmra.mxu0 %v2203
        %v2281 = vpop.f32.mrf.mxu0
        %v2282 = vadd.f32 %v2163, %v2281
        %v2283 = vpop.f32.mrf.mxu0
        %v2284 = vadd.f32 %v2163, %v2283
        %2285 = vmatmul.bf16.gmra.mxu0 %v2205
        %v2286 = vpop.f32.mrf.mxu0
        %v2287 = vadd.f32 %v2163, %v2286
        %v2288 = vpop.f32.mrf.mxu0
        %v2289 = vadd.f32 %v2163, %v2288
        %2290 = vmatmul.bf16.gmra.mxu0 %v2207
        %v2291 = vpop.f32.mrf.mxu0
        %v2292 = vadd.f32 %v2163, %v2291
        %v2293 = vpop.f32.mrf.mxu0
        %v2294 = vadd.f32 %v2163, %v2293
        %2295 = vmatmul.bf16.gmra.mxu0 %v2209
        %v2296 = vpop.f32.mrf.mxu0
        %v2297 = vadd.f32 %v2163, %v2296
        %v2298 = vpop.f32.mrf.mxu0
        %v2299 = vadd.f32 %v2163, %v2298
        %2300 = vmatmul.bf16.gmra.mxu0 %v2211
        %v2301 = vpop.f32.mrf.mxu0
        %v2302 = vadd.f32 %v2163, %v2301
        %v2303 = vpop.f32.mrf.mxu0
        %v2304 = vadd.f32 %v2163, %v2303
        %2305 = vdwg.mxu0
        %v2306 = vmax.f32 %v2227, 0.0
        %v2307 = vmax.f32 %v2229, 0.0
        %v2308 = vmax.f32 %v2232, 0.0
        %v2309 = vmax.f32 %v2234, 0.0
        %v2310 = vmax.f32 %v2237, 0.0
        %v2311 = vmax.f32 %v2239, 0.0
        %v2312 = vmax.f32 %v2242, 0.0
        %v2313 = vmax.f32 %v2244, 0.0
        %v2314 = vmax.f32 %v2247, 0.0
        %v2315 = vmax.f32 %v2249, 0.0
        %v2316 = vmax.f32 %v2252, 0.0
        %v2317 = vmax.f32 %v2254, 0.0
        %v2318 = vmax.f32 %v2257, 0.0
        %v2319 = vmax.f32 %v2259, 0.0
        %v2320 = vmax.f32 %v2262, 0.0
        %v2321 = vmax.f32 %v2264, 0.0
        %v2322 = vmax.f32 %v2267, 0.0
        %v2323 = vmax.f32 %v2269, 0.0
        %v2324 = vmax.f32 %v2272, 0.0
        %v2325 = vmax.f32 %v2274, 0.0
        %v2326 = vmax.f32 %v2277, 0.0
        %v2327 = vmax.f32 %v2279, 0.0
        %v2328 = vmax.f32 %v2282, 0.0
        %v2329 = vmax.f32 %v2284, 0.0
        %v2330 = vmax.f32 %v2287, 0.0
        %v2331 = vmax.f32 %v2289, 0.0
        %v2332 = vmax.f32 %v2292, 0.0
        %v2333 = vmax.f32 %v2294, 0.0
        %v2334 = vmax.f32 %v2297, 0.0
        %v2335 = vmax.f32 %v2299, 0.0
        %v2336 = vmax.f32 %v2302, 0.0
        %v2337 = vmax.f32 %v2304, 0.0
        %2338 = vst [vmem:[%s182] sm:$0xff] %v2306
        %2339 = vst [vmem:[%s182 + $0x8] sm:$0xff] %v2307
        %2340 = vst [vmem:[%s182 + $0x10] sm:$0xff] %v2308
        %2341 = vst [vmem:[%s182 + $0x18] sm:$0xff] %v2309
        %2342 = vst [vmem:[%s182 + $0x20] sm:$0xff] %v2310
        %2343 = vst [vmem:[%s182 + $0x28] sm:$0xff] %v2311
        %2344 = vst [vmem:[%s182 + $0x30] sm:$0xff] %v2312
        %2345 = vst [vmem:[%s182 + $0x38] sm:$0xff] %v2313
        %2346 = vst [vmem:[%s182 + $0x40] sm:$0xff] %v2314
        %2347 = vst [vmem:[%s182 + $0x48] sm:$0xff] %v2315
        %2348 = vst [vmem:[%s182 + $0x50] sm:$0xff] %v2316
        %2349 = vst [vmem:[%s182 + $0x58] sm:$0xff] %v2317
        %2350 = vst [vmem:[%s182 + $0x60] sm:$0xff] %v2318
        %2351 = vst [vmem:[%s182 + $0x68] sm:$0xff] %v2319
        %2352 = vst [vmem:[%s182 + $0x70] sm:$0xff] %v2320
        %2353 = vst [vmem:[%s182 + $0x78] sm:$0xff] %v2321
        %2354 = vst [vmem:[%s182 + $0x80] sm:$0xff] %v2322
        %2355 = vst [vmem:[%s182 + $0x88] sm:$0xff] %v2323
        %2356 = vst [vmem:[%s182 + $0x90] sm:$0xff] %v2324
        %2357 = vst [vmem:[%s182 + $0x98] sm:$0xff] %v2325
        %2358 = vst [vmem:[%s182 + $0xa0] sm:$0xff] %v2326
        %2359 = vst [vmem:[%s182 + $0xa8] sm:$0xff] %v2327
        %2360 = vst [vmem:[%s182 + $0xb0] sm:$0xff] %v2328
        %2361 = vst [vmem:[%s182 + $0xb8] sm:$0xff] %v2329
        %2362 = vst [vmem:[%s182 + $0xc0] sm:$0xff] %v2330
        %2363 = vst [vmem:[%s182 + $0xc8] sm:$0xff] %v2331
        %2364 = vst [vmem:[%s182 + $0xd0] sm:$0xff] %v2332
        %2365 = vst [vmem:[%s182 + $0xd8] sm:$0xff] %v2333
        %2366 = vst [vmem:[%s182 + $0xe0] sm:$0xff] %v2334
        %2367 = vst [vmem:[%s182 + $0xe8] sm:$0xff] %v2335
        %2368 = vst [vmem:[%s182 + $0xf0] sm:$0xff] %v2336
        %2369 = vst [vmem:[%s182 + $0xf8] sm:$0xff] %v2337
        %s2370 = sand.u32 %s109, 1
        %s2371 = scalar_lea.sflag [#allocation3], %s2370
        %s2372 = sand.u32 %s109, 1
        %s2373 = smul.addr %s2372, 256
        %s2374 = scalar_lea.vmem [#allocation2], %s2373
        // Predicated region
        $region33: #{tpu_custom_call.1} parent=31 // pred_check
          %p2375 = pneg %p119
        $region34: #{tpu_custom_call.1} parent=31 // pred_check_branch
          %2377 = sbr.rel (%p2375) target = $region36
        $region35: #{tpu_custom_call.1} parent=31 // pred_region
          %s2378 = smul.u32 32, %s22
          %2380 = vsyncadd %s2371, 0
          %s2381 = smul.addr %s21, 32
          %s2382 = sadd.s32 %s2378, %s2381
          %s2383 = smul.addr %s2382, 8
          %s2384 = scalar_lea.hbm %s3, %s2383
          %s2385 = sshll.u32 %s2374, 4
          %s2386 = int_to_ptr.vmem [resolvable:$true] %s2385
          %s2387 = sshll.u32 %s2384, 4
          %s2388 = int_to_ptr.hbm [resolvable:$true] %s2387
          %2393 = dma.vmem_to_hbm [thread:$0]  %s2386, 4096, %s2388, %s2371, 128, 128, 8
        $region36: #{tpu_custom_call.1} parent=31 // pred_fallthru
          _
      $region32: #{tpu_custom_call.1} parent=5 // pred_fallthru
        _
      %p2394 = scmp.le.s32.totalorder 2, %s12
      // Predicated region
      $region37: #{tpu_custom_call.1} parent=5 // pred_check
        %p2395 = pneg %p2394
      $region38: #{tpu_custom_call.1} parent=5 // pred_check_branch
        %2397 = sbr.rel (%p2395) target = $region40
      $region39: #{tpu_custom_call.1} parent=5 // pred_region
        %s2398 = ssub.s32 %s12, 2
        // Predicated region
        $region41: #{tpu_custom_call.1} parent=39 // pred_check
          %p2399 = pneg %p125
        $region42: #{tpu_custom_call.1} parent=39 // pred_check_branch
          %2401 = sbr.rel (%p2399) target = $region44
        $region43: #{tpu_custom_call.1} parent=39 // pred_region
          %s2402 = sand.u32 %s110, 1
          %s2403 = scalar_lea.sflag [#allocation3], %s2402
          %s2404 = sand.u32 %s110, 1
          %s2405 = smul.addr %s2404, 256
          %s2406 = scalar_lea.vmem [#allocation2], %s2405
          %2408 = dma.done %s2403, 4096
        $region44: #{tpu_custom_call.1} parent=39 // pred_fallthru
          _
      $region40: #{tpu_custom_call.1} parent=5 // pred_fallthru
        _
    $region6: #{tpu_custom_call.1} parent=1 // loop_footer
      %s16 = sadd.s32 1, %s12
    $region7: #{tpu_custom_call.1} parent=1 // loop_footer_branch
      %11 = sbr.rel target = $region3
    $region8: #{tpu_custom_call.1} parent=1 // loop_exit
      _
    %2409 = vsyncpa [#allocation3], 1
    %s2410 = scalar_lea.sflag [#allocation3], 1
    %2411 = vsyncpa %s2410, 1

</llo_original>
